<compile_context>
chip_gen: v7x
topology: tpu7x:2x2x1
jax: 0.10.0
libtpu: 0.0.40
codegen_flags: <defaults>
</compile_context>

<pallas_src>
import functools
import math

import jax
import jax.numpy as jnp
import numpy as np
from jax.experimental import pallas as pl
from jax.experimental.pallas import tpu as pltpu


# ----------------------------------------------------------------------------
# Pallas kernel: one residual attention block for one batch's (S_pad, D) tile.
# ----------------------------------------------------------------------------
def _block_kernel(
    x_ref,        # (S_pad, D)   activation dtype (one batch, batch dim squeezed)
    ln1_w_ref,    # (1, D)       f32
    ln1_b_ref,    # (1, D)       f32
    wqkv_ref,     # (D, 3D)      compute dtype (in_proj_weight.T, q cols pre-scaled)
    bqkv_ref,     # (1, 3D)      f32           (q part pre-scaled)
    wo_ref,       # (D, D)       compute dtype (out_proj.weight.T)
    bo_ref,       # (1, D)       f32
    ln2_w_ref,    # (1, D)       f32
    ln2_b_ref,    # (1, D)       f32
    wfc_ref,      # (D, 4D)      compute dtype (c_fc.weight.T)
    bfc_ref,      # (1, 4D)      f32
    wproj_ref,    # (4D, D)      compute dtype (c_proj.weight.T)
    bproj_ref,    # (1, D)       f32
    out_ref,      # (S_pad, D)   activation dtype
    acc_ref,      # (S_pad, D)   f32 VMEM scratch (MLP/residual accumulator)
    *,
    n_head: int,
    seq_valid: int,
    mlp_chunk: int,
    compute_dtype,
    approx_recip: bool,
):
    eps = jnp.float32(1e-5)
    x = x_ref[...].astype(jnp.float32)                    # (S, D) f32
    S, D = x.shape
    H = n_head
    Dh = D // H

    def layer_norm(v, w, b):
        mu = jnp.mean(v, axis=-1, keepdims=True)
        var = jnp.mean(jnp.square(v - mu), axis=-1, keepdims=True)
        return (v - mu) * jax.lax.rsqrt(var + eps) * w + b

    def recip(v):
        if approx_recip:
            return pl.reciprocal(v, approx=True)
        return pl.reciprocal(v)

    # ---- attention branch ---------------------------------------------------
    h1 = layer_norm(x, ln1_w_ref[...], ln1_b_ref[...]).astype(compute_dtype)
    qkv = (
        jnp.dot(h1, wqkv_ref[...], preferred_element_type=jnp.float32)
        + bqkv_ref[...]
    ).astype(compute_dtype)                                # (S, 3D), cast once

    # Pack heads into a leading batch dim -> batched score / context matmuls
    # (all heads issued together; no unrolled per-head dots / masks).
    q = jnp.stack([qkv[:, h * Dh:(h + 1) * Dh] for h in range(H)], axis=0)
    k = jnp.stack([qkv[:, D + h * Dh:D + (h + 1) * Dh] for h in range(H)],
                  axis=0)
    v = jnp.stack([qkv[:, 2 * D + h * Dh:2 * D + (h + 1) * Dh]
                   for h in range(H)], axis=0)             # (H, S, Dh)

    sc = jnp.einsum("hqd,hkd->hqk", q, k,
                    preferred_element_type=jnp.float32)    # (H, S, S) f32
    if seq_valid < S:                                      # mask padded keys once
        key_idx = jax.lax.broadcasted_iota(jnp.int32, (S, S), 1)
        sc = sc + jnp.where(key_idx < seq_valid,
                            jnp.float32(0.0), jnp.float32(-1e30))
    sc = sc - jnp.max(sc, axis=-1, keepdims=True)
    p = jnp.exp(sc)
    p = p * recip(jnp.sum(p, axis=-1, keepdims=True))

    ctx = jnp.einsum("hqk,hkd->hqd", p.astype(compute_dtype), v,
                     preferred_element_type=jnp.float32)   # (H, S, Dh) f32
    # Lane-concatenate heads -> ONE full-depth out-projection matmul.
    ctx2 = jnp.concatenate([ctx[h] for h in range(H)], axis=-1)   # (S, D) f32
    attn = jnp.dot(ctx2.astype(compute_dtype), wo_ref[...],
                   preferred_element_type=jnp.float32)            # (S, D) f32

    x = x + attn + bo_ref[...]

    # ---- MLP branch (c_fc -> QuickGELU -> c_proj), chunked over hidden dim --
    h2 = layer_norm(x, ln2_w_ref[...], ln2_b_ref[...]).astype(compute_dtype)
    Dff = wfc_ref.shape[1]
    acc_ref[...] = x + bproj_ref[...]                      # residual + c_proj bias
    for c in range(0, Dff, mlp_chunk):                     # accumulate into VMEM
        fc = (
            jnp.dot(h2, wfc_ref[:, c:c + mlp_chunk],
                    preferred_element_type=jnp.float32)
            + bfc_ref[:, c:c + mlp_chunk]
        )                                                  # (S, chunk) f32
        g = fc * jax.nn.sigmoid(jnp.float32(1.702) * fc)   # QuickGELU (f32)
        acc_ref[...] += jnp.dot(g.astype(compute_dtype),
                                wproj_ref[c:c + mlp_chunk, :],
                                preferred_element_type=jnp.float32)

    out_ref[...] = acc_ref[...].astype(out_ref.dtype)


def _pick_mlp_chunk(dff: int) -> int:
    for c in (512, 256, 128):
        if dff % c == 0:
            return c
    return dff


def _vmem_capacity_bytes() -> int:
    try:
        return int(pltpu.get_tpu_info().vmem_capacity_bytes)
    except Exception:
        return 64 * 1024 * 1024        # conservative (v7x-sized) fallback


def _vmem_limit_bytes(weights, S, D, n_head, mlp_chunk,
                      act_itemsize, compute_itemsize):
    f32 = 4
    param = sum(int(np.prod(w.shape)) * jnp.dtype(w.dtype).itemsize
                for w in weights)                          # single-buffered now
    act_io = 2 * 2 * S * D * act_itemsize                  # x in/out double-buffered
    qkv = S * 3 * D * (f32 + compute_itemsize)             # f32 qkv + cast copy
    heads = 3 * S * D * compute_itemsize                   # packed q, k, v
    scores = n_head * S * S * (2 * f32 + compute_itemsize)  # sc, p (+cast)
    ctx = 3 * S * D * f32                                   # ctx, ctx2, attn
    mlp = 2 * S * mlp_chunk * (f32 + compute_itemsize)
    scratch = S * D * f32
    need = (param + act_io + qkv + heads + scores + ctx + mlp + scratch
            + 8 * 1024 * 1024)                              # headroom
    cap = int(0.85 * _vmem_capacity_bytes())                # generation-aware cap
    return int(max(32 * 1024 * 1024, min(need, cap)))


# ----------------------------------------------------------------------------
# One pallas_call per layer: grid over batch, weights resident in VMEM.
# ----------------------------------------------------------------------------
def _run_block(x3, p, *, n_head: int, seq_valid: int):
    B, S_pad, D = x3.shape
    compute_dtype = jnp.dtype(p["wqkv"].dtype)
    approx_recip = compute_dtype != jnp.dtype(jnp.float32)
    Dff = p["wfc"].shape[1]
    mlp_chunk = _pick_mlp_chunk(Dff)

    kernel = functools.partial(
        _block_kernel,
        n_head=n_head, seq_valid=seq_valid, mlp_chunk=mlp_chunk,
        compute_dtype=compute_dtype, approx_recip=approx_recip)

    weights = (
        p["ln1_w"], p["ln1_b"], p["wqkv"], p["bqkv"], p["wo"], p["bo"],
        p["ln2_w"], p["ln2_b"], p["wfc"], p["bfc"], p["wproj"], p["bproj"],
    )

    # Whole-array VMEM residency: single copy, no double-buffering of weights.
    w_spec = pl.BlockSpec(memory_space=pltpu.MemorySpace.VMEM)
    x_spec = pl.BlockSpec((None, S_pad, D), lambda b: (b, 0, 0))  # squeeze batch

    grid_spec = pltpu.PrefetchScalarGridSpec(
        num_scalar_prefetch=0,
        grid=(B,),
        in_specs=[x_spec] + [w_spec] * len(weights),
        out_specs=x_spec,
        scratch_shapes=[pltpu.VMEM((S_pad, D), jnp.float32)],
    )

    vmem_limit = _vmem_limit_bytes(
        weights, S_pad, D, n_head, mlp_chunk,
        act_itemsize=jnp.dtype(x3.dtype).itemsize,
        compute_itemsize=compute_dtype.itemsize)

    return pl.pallas_call(
        kernel,
        out_shape=jax.ShapeDtypeStruct((B, S_pad, D), x3.dtype),
        grid_spec=grid_spec,
        compiler_params=pltpu.CompilerParams(
            dimension_semantics=("parallel",),
            vmem_limit_bytes=vmem_limit,
        ),
    )(x3, *weights)


# ----------------------------------------------------------------------------
# Parameter prep (hoisted, one-time): transpose, scale-fold, dtype cast.
# ----------------------------------------------------------------------------
def prepare_params(params, *, n_head: int, compute_dtype=jnp.bfloat16):
    prepped = []
    for p in params:
        D = p["ln1_w"].shape[0]
        Dh = D // n_head
        scale = jnp.float32(1.0 / math.sqrt(Dh))
        # Fold 1/sqrt(Dh) into the q part of in_proj (one-time).
        wqkv_t = jnp.asarray(p["wqkv"], jnp.float32).T                 # (D, 3D)
        wqkv_t = jnp.concatenate([wqkv_t[:, :D] * scale, wqkv_t[:, D:]], axis=1)
        bqkv = jnp.asarray(p["bqkv"], jnp.float32)
        bqkv = jnp.concatenate([bqkv[:D] * scale, bqkv[D:]])
        prepped.append({
            "ln1_w": jnp.asarray(p["ln1_w"], jnp.float32).reshape(1, D),
            "ln1_b": jnp.asarray(p["ln1_b"], jnp.float32).reshape(1, D),
            "wqkv": wqkv_t.astype(compute_dtype),                       # (D, 3D)
            "bqkv": bqkv.reshape(1, 3 * D),
            "wo": jnp.asarray(p["wo"], jnp.float32).T.astype(compute_dtype),  # (D, D)
            "bo": jnp.asarray(p["bo"], jnp.float32).reshape(1, D),
            "ln2_w": jnp.asarray(p["ln2_w"], jnp.float32).reshape(1, D),
            "ln2_b": jnp.asarray(p["ln2_b"], jnp.float32).reshape(1, D),
            "wfc": jnp.asarray(p["wfc"], jnp.float32).T.astype(compute_dtype),   # (D, 4D)
            "bfc": jnp.asarray(p["bfc"], jnp.float32).reshape(1, 4 * D),
            "wproj": jnp.asarray(p["wproj"], jnp.float32).T.astype(compute_dtype),  # (4D, D)
            "bproj": jnp.asarray(p["bproj"], jnp.float32).reshape(1, D),
        })
    return prepped


def transformer_forward(x, prepped_params, *, n_head: int, activation_dtype=None):
    """x: (S, B, D) (PyTorch nn.MultiheadAttention layout). attn_mask=None only.

    activation_dtype: optional inter-layer activation dtype (e.g. bf16);
    all in-kernel layernorm/softmax/residual math stays f32.
    """
    S, B, D = x.shape
    act_dtype = (jnp.dtype(activation_dtype) if activation_dtype is not None
                 else jnp.dtype(x.dtype))
    S_pad = -(-S // 8) * 8                         # pad sequence to multiple of 8
    x3 = jnp.transpose(x, (1, 0, 2)).astype(act_dtype)     # (B, S, D)
    if S_pad != S:
        x3 = jnp.pad(x3, ((0, 0), (0, S_pad - S), (0, 0)))
    for p in prepped_params:
        x3 = _run_block(x3, p, n_head=n_head, seq_valid=S)
    if S_pad != S:
        x3 = x3[:, :S, :]                          # padded query rows dropped here
    return jnp.transpose(x3, (1, 0, 2)).astype(x.dtype)    # back to (S, B, D)


# ----------------------------------------------------------------------------
# Pure-JAX reference (for correctness check)
# ----------------------------------------------------------------------------
def _ref_block(x, p, n_head):
    S, B, D = x.shape
    Dh = D // n_head

    def ln(v, w, b):
        mu = v.mean(-1, keepdims=True)
        var = ((v - mu) ** 2).mean(-1, keepdims=True)
        return (v - mu) / jnp.sqrt(var + 1e-5) * w + b

    h = ln(x, p["ln1_w"], p["ln1_b"])
    qkv = h @ p["wqkv"].T + p["bqkv"]
    q, k, v = jnp.split(qkv, 3, axis=-1)
    q = q.reshape(S, B, n_head, Dh) / jnp.sqrt(Dh)
    k = k.reshape(S, B, n_head, Dh)
    v = v.reshape(S, B, n_head, Dh)
    sc = jnp.einsum("ibhd,jbhd->bhij", q, k)
    pa = jax.nn.softmax(sc, axis=-1)
    ctx = jnp.einsum("bhij,jbhd->ibhd", pa, v).reshape(S, B, D)
    x = x + ctx @ p["wo"].T + p["bo"]
    h2 = ln(x, p["ln2_w"], p["ln2_b"])
    fc = h2 @ p["wfc"].T + p["bfc"]
    g = fc * jax.nn.sigmoid(1.702 * fc)
    return x + g @ p["wproj"].T + p["bproj"]


def _ref_transformer(x, params, n_head):
    for p in params:
        x = _ref_block(x, p, n_head)
    return x


# ----------------------------------------------------------------------------
# Deterministic parameter init (shapes follow nn.MultiheadAttention / nn.Linear)
# ----------------------------------------------------------------------------
def init_params(key, width, layers):
    params = []
    for l in range(layers):
        ks = jax.random.split(jax.random.fold_in(key, l), 4)
        params.append({
            "ln1_w": jnp.ones((width,), jnp.float32),
            "ln1_b": jnp.zeros((width,), jnp.float32),
            "wqkv": 0.02 * jax.random.normal(ks[0], (3 * width, width), jnp.float32),
            "bqkv": jnp.zeros((3 * width,), jnp.float32),
            "wo": 0.02 * jax.random.normal(ks[1], (width, width), jnp.float32),
            "bo": jnp.zeros((width,), jnp.float32),
            "ln2_w": jnp.ones((width,), jnp.float32),
            "ln2_b": jnp.zeros((width,), jnp.float32),
            "wfc": 0.02 * jax.random.normal(ks[2], (4 * width, width), jnp.float32),
            "bfc": 0.01 * jnp.ones((4 * width,), jnp.float32),
            "wproj": 0.02 * jax.random.normal(ks[3], (width, 4 * width), jnp.float32),
            "bproj": jnp.zeros((width,), jnp.float32),
        })
    return params


if __name__ == "__main__":
    WIDTH, LAYERS, HEADS = 32, 2, 4
    SEQ, BATCH = 8, 2

    key = jax.random.PRNGKey(0)
    kx, kp = jax.random.split(key)
    x = jax.random.normal(kx, (SEQ, BATCH, WIDTH), jnp.float32)   # (S, B, D)
    params = init_params(kp, WIDTH, LAYERS)
    ref = jax.block_until_ready(_ref_transformer(x, params, HEADS))

    # f32 compute path, f32 activations: strict numerical check.
    p_f32 = prepare_params(params, n_head=HEADS, compute_dtype=jnp.float32)
    out_f32 = jax.block_until_ready(transformer_forward(x, p_f32, n_head=HEADS))
    np.testing.assert_allclose(np.asarray(out_f32), np.asarray(ref),
                               rtol=1e-4, atol=1e-4)

    # Production path: bf16 MXU weights + bf16 inter-layer activations: loose.
    p_bf16 = prepare_params(params, n_head=HEADS, compute_dtype=jnp.bfloat16)
    out_bf16 = jax.block_until_ready(
        transformer_forward(x, p_bf16, n_head=HEADS,
                            activation_dtype=jnp.bfloat16))
    np.testing.assert_allclose(np.asarray(out_bf16), np.asarray(ref),
                               rtol=4e-2, atol=4e-2)

    # Non-multiple-of-8 sequence exercises the padding + key-mask path.
    SEQ2 = 7
    x2 = jax.random.normal(jax.random.fold_in(kx, 1), (SEQ2, BATCH, WIDTH),
                           jnp.float32)
    ref2 = jax.block_until_ready(_ref_transformer(x2, params, HEADS))
    out2 = jax.block_until_ready(transformer_forward(x2, p_f32, n_head=HEADS))
    np.testing.assert_allclose(np.asarray(out2), np.asarray(ref2),
                               rtol=1e-4, atol=1e-4)

    print("KERNEL_OK")
</pallas_src>

<mosaic_0001>
module attributes {stable_mosaic.version = 11 : i64} {
  func.func @_block_kernel(%arg0: i32, %arg1: memref<1x8x32xf32, #tpu.memory_space<vmem>>, %arg2: memref<1x32xf32, #tpu.memory_space<vmem>>, %arg3: memref<1x32xf32, #tpu.memory_space<vmem>>, %arg4: memref<32x96xf32, #tpu.memory_space<vmem>>, %arg5: memref<1x96xf32, #tpu.memory_space<vmem>>, %arg6: memref<32x32xf32, #tpu.memory_space<vmem>>, %arg7: memref<1x32xf32, #tpu.memory_space<vmem>>, %arg8: memref<1x32xf32, #tpu.memory_space<vmem>>, %arg9: memref<1x32xf32, #tpu.memory_space<vmem>>, %arg10: memref<32x128xf32, #tpu.memory_space<vmem>>, %arg11: memref<1x128xf32, #tpu.memory_space<vmem>>, %arg12: memref<128x32xf32, #tpu.memory_space<vmem>>, %arg13: memref<1x32xf32, #tpu.memory_space<vmem>>, %arg14: memref<1x8x32xf32, #tpu.memory_space<vmem>>, %arg15: memref<8x32xf32, #tpu.memory_space<vmem>>) attributes {dimension_semantics = [#tpu.dimension_semantics<parallel>], iteration_bounds = array<i64: 2>, scalar_prefetch = 0 : i64, scratch_operands = 1 : i64, tpu.core_type = #tpu.core_type<tc>, window_params = [{transform_indices = @transform_0, window_bounds = array<i64: 1, 8, 32>}, {pipeline_mode = #tpu.pipeline_mode<synchronous>, transform_indices = @transform_1, window_bounds = array<i64: 1, 32>}, {pipeline_mode = #tpu.pipeline_mode<synchronous>, transform_indices = @transform_2, window_bounds = array<i64: 1, 32>}, {pipeline_mode = #tpu.pipeline_mode<synchronous>, transform_indices = @transform_3, window_bounds = array<i64: 32, 96>}, {pipeline_mode = #tpu.pipeline_mode<synchronous>, transform_indices = @transform_4, window_bounds = array<i64: 1, 96>}, {pipeline_mode = #tpu.pipeline_mode<synchronous>, transform_indices = @transform_5, window_bounds = array<i64: 32, 32>}, {pipeline_mode = #tpu.pipeline_mode<synchronous>, transform_indices = @transform_6, window_bounds = array<i64: 1, 32>}, {pipeline_mode = #tpu.pipeline_mode<synchronous>, transform_indices = @transform_7, window_bounds = array<i64: 1, 32>}, {pipeline_mode = #tpu.pipeline_mode<synchronous>, transform_indices = @transform_8, window_bounds = array<i64: 1, 32>}, {pipeline_mode = #tpu.pipeline_mode<synchronous>, transform_indices = @transform_9, window_bounds = array<i64: 32, 128>}, {pipeline_mode = #tpu.pipeline_mode<synchronous>, transform_indices = @transform_10, window_bounds = array<i64: 1, 128>}, {pipeline_mode = #tpu.pipeline_mode<synchronous>, transform_indices = @transform_11, window_bounds = array<i64: 128, 32>}, {pipeline_mode = #tpu.pipeline_mode<synchronous>, transform_indices = @transform_12, window_bounds = array<i64: 1, 32>}, {transform_indices = @transform_13, window_bounds = array<i64: 1, 8, 32>}]} {
    %c0 = arith.constant 0 : index
    %c0_0 = arith.constant 0 : index
    %c0_1 = arith.constant 0 : index
    %0 = vector.load %arg1[%c0, %c0_0, %c0_1] : memref<1x8x32xf32, #tpu.memory_space<vmem>>, vector<1x8x32xf32>
    %1 = vector.shape_cast %0 : vector<1x8x32xf32> to vector<8x32xf32>
    %c0_2 = arith.constant 0 : index
    %c0_3 = arith.constant 0 : index
    %2 = vector.load %arg2[%c0_2, %c0_3] : memref<1x32xf32, #tpu.memory_space<vmem>>, vector<1x32xf32>
    %c0_4 = arith.constant 0 : index
    %c0_5 = arith.constant 0 : index
    %3 = vector.load %arg3[%c0_4, %c0_5] : memref<1x32xf32, #tpu.memory_space<vmem>>, vector<1x32xf32>
    %cst = arith.constant dense<0.000000e+00> : vector<8xf32>
    %4 = vector.multi_reduction <add>, %1, %cst [1] : vector<8x32xf32> to vector<8xf32>
    %5 = vector.shape_cast %4 : vector<8xf32> to vector<8x1xf32>
    %cst_6 = arith.constant 3.200000e+01 : f32
    %6 = vector.broadcast %cst_6 : f32 to vector<8x1xf32>
    %7 = arith.divf %5, %6 : vector<8x1xf32>
    %8 = vector.broadcast %7 : vector<8x1xf32> to vector<8x32xf32>
    %9 = arith.subf %1, %8 : vector<8x32xf32>
    %10 = arith.mulf %9, %9 : vector<8x32xf32>
    %cst_7 = arith.constant dense<0.000000e+00> : vector<8xf32>
    %11 = vector.multi_reduction <add>, %10, %cst_7 [1] : vector<8x32xf32> to vector<8xf32>
    %12 = vector.shape_cast %11 : vector<8xf32> to vector<8x1xf32>
    %cst_8 = arith.constant 3.200000e+01 : f32
    %13 = vector.broadcast %cst_8 : f32 to vector<8x1xf32>
    %14 = arith.divf %12, %13 : vector<8x1xf32>
    %15 = vector.broadcast %7 : vector<8x1xf32> to vector<8x32xf32>
    %16 = arith.subf %1, %15 : vector<8x32xf32>
    %cst_9 = arith.constant 9.99999974E-6 : f32
    %17 = vector.broadcast %cst_9 : f32 to vector<8x1xf32>
    %18 = arith.addf %14, %17 : vector<8x1xf32>
    %19 = math.rsqrt %18 : vector<8x1xf32>
    %20 = vector.broadcast %19 : vector<8x1xf32> to vector<8x32xf32>
    %21 = arith.mulf %16, %20 : vector<8x32xf32>
    %22 = vector.broadcast %2 : vector<1x32xf32> to vector<8x32xf32>
    %23 = arith.mulf %21, %22 : vector<8x32xf32>
    %24 = vector.broadcast %3 : vector<1x32xf32> to vector<8x32xf32>
    %25 = arith.addf %23, %24 : vector<8x32xf32>
    %c0_10 = arith.constant 0 : index
    %c0_11 = arith.constant 0 : index
    %26 = vector.load %arg4[%c0_10, %c0_11] : memref<32x96xf32, #tpu.memory_space<vmem>>, vector<32x96xf32>
    %cst_12 = arith.constant dense<0.000000e+00> : vector<8x96xf32>
    %27 = tpu.matmul %25, %26, %cst_12 {dimension_numbers = #tpu.dot_dimension_numbers<[1], [0], [0], [1], [0, 0, 1, 1], [], []>} : vector<8x32xf32>, vector<32x96xf32>, vector<8x96xf32> -> vector<8x96xf32>
    %c0_13 = arith.constant 0 : index
    %c0_14 = arith.constant 0 : index
    %28 = vector.load %arg5[%c0_13, %c0_14] : memref<1x96xf32, #tpu.memory_space<vmem>>, vector<1x96xf32>
    %29 = vector.broadcast %28 : vector<1x96xf32> to vector<8x96xf32>
    %30 = arith.addf %27, %29 : vector<8x96xf32>
    %31 = vector.extract_strided_slice %30 {offsets = [0, 0], sizes = [8, 8], strides = [1, 1]} : vector<8x96xf32> to vector<8x8xf32>
    %32 = vector.extract_strided_slice %30 {offsets = [0, 8], sizes = [8, 8], strides = [1, 1]} : vector<8x96xf32> to vector<8x8xf32>
    %33 = vector.extract_strided_slice %30 {offsets = [0, 16], sizes = [8, 8], strides = [1, 1]} : vector<8x96xf32> to vector<8x8xf32>
    %34 = vector.extract_strided_slice %30 {offsets = [0, 24], sizes = [8, 8], strides = [1, 1]} : vector<8x96xf32> to vector<8x8xf32>
    %35 = vector.shape_cast %31 : vector<8x8xf32> to vector<1x8x8xf32>
    %36 = vector.shape_cast %32 : vector<8x8xf32> to vector<1x8x8xf32>
    %37 = vector.shape_cast %33 : vector<8x8xf32> to vector<1x8x8xf32>
    %38 = vector.shape_cast %34 : vector<8x8xf32> to vector<1x8x8xf32>
    %39 = tpu.concatenate %35, %36, %37, %38 in 0 : vector<1x8x8xf32>, vector<1x8x8xf32>, vector<1x8x8xf32>, vector<1x8x8xf32> -> vector<4x8x8xf32>
    %40 = vector.extract_strided_slice %30 {offsets = [0, 32], sizes = [8, 8], strides = [1, 1]} : vector<8x96xf32> to vector<8x8xf32>
    %41 = vector.extract_strided_slice %30 {offsets = [0, 40], sizes = [8, 8], strides = [1, 1]} : vector<8x96xf32> to vector<8x8xf32>
    %42 = vector.extract_strided_slice %30 {offsets = [0, 48], sizes = [8, 8], strides = [1, 1]} : vector<8x96xf32> to vector<8x8xf32>
    %43 = vector.extract_strided_slice %30 {offsets = [0, 56], sizes = [8, 8], strides = [1, 1]} : vector<8x96xf32> to vector<8x8xf32>
    %44 = vector.shape_cast %40 : vector<8x8xf32> to vector<1x8x8xf32>
    %45 = vector.shape_cast %41 : vector<8x8xf32> to vector<1x8x8xf32>
    %46 = vector.shape_cast %42 : vector<8x8xf32> to vector<1x8x8xf32>
    %47 = vector.shape_cast %43 : vector<8x8xf32> to vector<1x8x8xf32>
    %48 = tpu.concatenate %44, %45, %46, %47 in 0 : vector<1x8x8xf32>, vector<1x8x8xf32>, vector<1x8x8xf32>, vector<1x8x8xf32> -> vector<4x8x8xf32>
    %49 = vector.extract_strided_slice %30 {offsets = [0, 64], sizes = [8, 8], strides = [1, 1]} : vector<8x96xf32> to vector<8x8xf32>
    %50 = vector.extract_strided_slice %30 {offsets = [0, 72], sizes = [8, 8], strides = [1, 1]} : vector<8x96xf32> to vector<8x8xf32>
    %51 = vector.extract_strided_slice %30 {offsets = [0, 80], sizes = [8, 8], strides = [1, 1]} : vector<8x96xf32> to vector<8x8xf32>
    %52 = vector.extract_strided_slice %30 {offsets = [0, 88], sizes = [8, 8], strides = [1, 1]} : vector<8x96xf32> to vector<8x8xf32>
    %53 = vector.shape_cast %49 : vector<8x8xf32> to vector<1x8x8xf32>
    %54 = vector.shape_cast %50 : vector<8x8xf32> to vector<1x8x8xf32>
    %55 = vector.shape_cast %51 : vector<8x8xf32> to vector<1x8x8xf32>
    %56 = vector.shape_cast %52 : vector<8x8xf32> to vector<1x8x8xf32>
    %57 = tpu.concatenate %53, %54, %55, %56 in 0 : vector<1x8x8xf32>, vector<1x8x8xf32>, vector<1x8x8xf32>, vector<1x8x8xf32> -> vector<4x8x8xf32>
    "tpu.trace_start"() <{level = 10 : i32, message = "hqd,hkd->hqk"}> : () -> ()
    %cst_15 = arith.constant dense<0.000000e+00> : vector<4x8x8xf32>
    %58 = tpu.matmul %39, %48, %cst_15 {dimension_numbers = #tpu.dot_dimension_numbers<[2], [2], [1], [1], [0, 0, 0, 1, 1, 1], [0], [0]>} : vector<4x8x8xf32>, vector<4x8x8xf32>, vector<4x8x8xf32> -> vector<4x8x8xf32>
    "tpu.trace_stop"() : () -> ()
    %cst_16 = arith.constant dense<0xFF800000> : vector<4x8xf32>
    %59 = vector.multi_reduction <maximumf>, %58, %cst_16 [2] : vector<4x8x8xf32> to vector<4x8xf32>
    %60 = vector.shape_cast %59 : vector<4x8xf32> to vector<4x8x1xf32>
    %61 = vector.broadcast %60 : vector<4x8x1xf32> to vector<4x8x8xf32>
    %62 = arith.subf %58, %61 : vector<4x8x8xf32>
    %63 = math.exp %62 : vector<4x8x8xf32>
    %cst_17 = arith.constant dense<0.000000e+00> : vector<4x8xf32>
    %64 = vector.multi_reduction <add>, %63, %cst_17 [2] : vector<4x8x8xf32> to vector<4x8xf32>
    %65 = vector.shape_cast %64 : vector<4x8xf32> to vector<4x8x1xf32>
    %66 = tpu.reciprocal %65 : vector<4x8x1xf32> -> vector<4x8x1xf32>
    %67 = vector.broadcast %66 : vector<4x8x1xf32> to vector<4x8x8xf32>
    %68 = arith.mulf %63, %67 : vector<4x8x8xf32>
    "tpu.trace_start"() <{level = 10 : i32, message = "hqk,hkd->hqd"}> : () -> ()
    %cst_18 = arith.constant dense<0.000000e+00> : vector<4x8x8xf32>
    %69 = tpu.matmul %68, %57, %cst_18 {dimension_numbers = #tpu.dot_dimension_numbers<[2], [1], [1], [2], [0, 0, 0, 1, 1, 2], [0], [0]>} : vector<4x8x8xf32>, vector<4x8x8xf32>, vector<4x8x8xf32> -> vector<4x8x8xf32>
    "tpu.trace_stop"() : () -> ()
    %70 = vector.extract_strided_slice %69 {offsets = [0, 0, 0], sizes = [1, 8, 8], strides = [1, 1, 1]} : vector<4x8x8xf32> to vector<1x8x8xf32>
    %71 = vector.shape_cast %70 : vector<1x8x8xf32> to vector<8x8xf32>
    %72 = vector.extract_strided_slice %69 {offsets = [1, 0, 0], sizes = [1, 8, 8], strides = [1, 1, 1]} : vector<4x8x8xf32> to vector<1x8x8xf32>
    %73 = vector.shape_cast %72 : vector<1x8x8xf32> to vector<8x8xf32>
    %74 = vector.extract_strided_slice %69 {offsets = [2, 0, 0], sizes = [1, 8, 8], strides = [1, 1, 1]} : vector<4x8x8xf32> to vector<1x8x8xf32>
    %75 = vector.shape_cast %74 : vector<1x8x8xf32> to vector<8x8xf32>
    %76 = vector.extract_strided_slice %69 {offsets = [3, 0, 0], sizes = [1, 8, 8], strides = [1, 1, 1]} : vector<4x8x8xf32> to vector<1x8x8xf32>
    %77 = vector.shape_cast %76 : vector<1x8x8xf32> to vector<8x8xf32>
    %78 = tpu.concatenate %71, %73, %75, %77 in 1 : vector<8x8xf32>, vector<8x8xf32>, vector<8x8xf32>, vector<8x8xf32> -> vector<8x32xf32>
    %c0_19 = arith.constant 0 : index
    %c0_20 = arith.constant 0 : index
    %79 = vector.load %arg6[%c0_19, %c0_20] : memref<32x32xf32, #tpu.memory_space<vmem>>, vector<32x32xf32>
    %cst_21 = arith.constant dense<0.000000e+00> : vector<8x32xf32>
    %80 = tpu.matmul %78, %79, %cst_21 {dimension_numbers = #tpu.dot_dimension_numbers<[1], [0], [0], [1], [0, 0, 1, 1], [], []>} : vector<8x32xf32>, vector<32x32xf32>, vector<8x32xf32> -> vector<8x32xf32>
    %81 = arith.addf %1, %80 : vector<8x32xf32>
    %c0_22 = arith.constant 0 : index
    %c0_23 = arith.constant 0 : index
    %82 = vector.load %arg7[%c0_22, %c0_23] : memref<1x32xf32, #tpu.memory_space<vmem>>, vector<1x32xf32>
    %83 = vector.broadcast %82 : vector<1x32xf32> to vector<8x32xf32>
    %84 = arith.addf %81, %83 : vector<8x32xf32>
    %c0_24 = arith.constant 0 : index
    %c0_25 = arith.constant 0 : index
    %85 = vector.load %arg8[%c0_24, %c0_25] : memref<1x32xf32, #tpu.memory_space<vmem>>, vector<1x32xf32>
    %c0_26 = arith.constant 0 : index
    %c0_27 = arith.constant 0 : index
    %86 = vector.load %arg9[%c0_26, %c0_27] : memref<1x32xf32, #tpu.memory_space<vmem>>, vector<1x32xf32>
    %cst_28 = arith.constant dense<0.000000e+00> : vector<8xf32>
    %87 = vector.multi_reduction <add>, %84, %cst_28 [1] : vector<8x32xf32> to vector<8xf32>
    %88 = vector.shape_cast %87 : vector<8xf32> to vector<8x1xf32>
    %cst_29 = arith.constant 3.200000e+01 : f32
    %89 = vector.broadcast %cst_29 : f32 to vector<8x1xf32>
    %90 = arith.divf %88, %89 : vector<8x1xf32>
    %91 = vector.broadcast %90 : vector<8x1xf32> to vector<8x32xf32>
    %92 = arith.subf %84, %91 : vector<8x32xf32>
    %93 = arith.mulf %92, %92 : vector<8x32xf32>
    %cst_30 = arith.constant dense<0.000000e+00> : vector<8xf32>
    %94 = vector.multi_reduction <add>, %93, %cst_30 [1] : vector<8x32xf32> to vector<8xf32>
    %95 = vector.shape_cast %94 : vector<8xf32> to vector<8x1xf32>
    %cst_31 = arith.constant 3.200000e+01 : f32
    %96 = vector.broadcast %cst_31 : f32 to vector<8x1xf32>
    %97 = arith.divf %95, %96 : vector<8x1xf32>
    %98 = vector.broadcast %90 : vector<8x1xf32> to vector<8x32xf32>
    %99 = arith.subf %84, %98 : vector<8x32xf32>
    %cst_32 = arith.constant 9.99999974E-6 : f32
    %100 = vector.broadcast %cst_32 : f32 to vector<8x1xf32>
    %101 = arith.addf %97, %100 : vector<8x1xf32>
    %102 = math.rsqrt %101 : vector<8x1xf32>
    %103 = vector.broadcast %102 : vector<8x1xf32> to vector<8x32xf32>
    %104 = arith.mulf %99, %103 : vector<8x32xf32>
    %105 = vector.broadcast %85 : vector<1x32xf32> to vector<8x32xf32>
    %106 = arith.mulf %104, %105 : vector<8x32xf32>
    %107 = vector.broadcast %86 : vector<1x32xf32> to vector<8x32xf32>
    %108 = arith.addf %106, %107 : vector<8x32xf32>
    %c0_33 = arith.constant 0 : index
    %c0_34 = arith.constant 0 : index
    %109 = vector.load %arg13[%c0_33, %c0_34] : memref<1x32xf32, #tpu.memory_space<vmem>>, vector<1x32xf32>
    %110 = vector.broadcast %109 : vector<1x32xf32> to vector<8x32xf32>
    %111 = arith.addf %84, %110 : vector<8x32xf32>
    %c0_35 = arith.constant 0 : index
    %c0_36 = arith.constant 0 : index
    %112 = vector.load %arg15[%c0_35, %c0_36] : memref<8x32xf32, #tpu.memory_space<vmem>>, vector<8x32xf32>
    tpu.vector_store %arg15[%c0_35, %c0_36], %111 {strides = array<i32>} : memref<8x32xf32, #tpu.memory_space<vmem>>, vector<8x32xf32>,
    %c0_37 = arith.constant 0 : index
    %c0_38 = arith.constant 0 : index
    %113 = vector.load %arg10[%c0_37, %c0_38] : memref<32x128xf32, #tpu.memory_space<vmem>>, vector<32x128xf32>
    %cst_39 = arith.constant dense<0.000000e+00> : vector<8x128xf32>
    %114 = tpu.matmul %108, %113, %cst_39 {dimension_numbers = #tpu.dot_dimension_numbers<[1], [0], [0], [1], [0, 0, 1, 1], [], []>} : vector<8x32xf32>, vector<32x128xf32>, vector<8x128xf32> -> vector<8x128xf32>
    %c0_40 = arith.constant 0 : index
    %c0_41 = arith.constant 0 : index
    %115 = vector.load %arg11[%c0_40, %c0_41] : memref<1x128xf32, #tpu.memory_space<vmem>>, vector<1x128xf32>
    %116 = vector.broadcast %115 : vector<1x128xf32> to vector<8x128xf32>
    %117 = arith.addf %114, %116 : vector<8x128xf32>
    %cst_42 = arith.constant 1.702000e+00 : f32
    %118 = vector.broadcast %cst_42 : f32 to vector<8x128xf32>
    %119 = arith.mulf %118, %117 : vector<8x128xf32>
    %120 = arith.negf %119 : vector<8x128xf32>
    %121 = math.exp %120 : vector<8x128xf32>
    %cst_43 = arith.constant 1.000000e+00 : f32
    %122 = vector.broadcast %cst_43 : f32 to vector<8x128xf32>
    %123 = arith.addf %122, %121 : vector<8x128xf32>
    %124 = arith.divf %122, %123 : vector<8x128xf32>
    %125 = arith.mulf %117, %124 : vector<8x128xf32>
    %c0_44 = arith.constant 0 : index
    %c0_45 = arith.constant 0 : index
    %126 = vector.load %arg15[%c0_44, %c0_45] : memref<8x32xf32, #tpu.memory_space<vmem>>, vector<8x32xf32>
    %c0_46 = arith.constant 0 : index
    %c0_47 = arith.constant 0 : index
    %127 = vector.load %arg12[%c0_46, %c0_47] : memref<128x32xf32, #tpu.memory_space<vmem>>, vector<128x32xf32>
    %cst_48 = arith.constant dense<0.000000e+00> : vector<8x32xf32>
    %128 = tpu.matmul %125, %127, %cst_48 {dimension_numbers = #tpu.dot_dimension_numbers<[1], [0], [0], [1], [0, 0, 1, 1], [], []>} : vector<8x128xf32>, vector<128x32xf32>, vector<8x32xf32> -> vector<8x32xf32>
    %129 = arith.addf %126, %128 : vector<8x32xf32>
    %c0_49 = arith.constant 0 : index
    %c0_50 = arith.constant 0 : index
    %130 = vector.load %arg15[%c0_49, %c0_50] : memref<8x32xf32, #tpu.memory_space<vmem>>, vector<8x32xf32>
    tpu.vector_store %arg15[%c0_49, %c0_50], %129 {strides = array<i32>} : memref<8x32xf32, #tpu.memory_space<vmem>>, vector<8x32xf32>,
    %c0_51 = arith.constant 0 : index
    %c0_52 = arith.constant 0 : index
    %131 = vector.load %arg15[%c0_51, %c0_52] : memref<8x32xf32, #tpu.memory_space<vmem>>, vector<8x32xf32>
    %c0_53 = arith.constant 0 : index
    %c0_54 = arith.constant 0 : index
    %c0_55 = arith.constant 0 : index
    %132 = vector.load %arg14[%c0_53, %c0_54, %c0_55] : memref<1x8x32xf32, #tpu.memory_space<vmem>>, vector<1x8x32xf32>
    %133 = vector.shape_cast %132 : vector<1x8x32xf32> to vector<8x32xf32>
    %134 = vector.shape_cast %131 : vector<8x32xf32> to vector<1x8x32xf32>
    tpu.vector_store %arg14[%c0_53, %c0_54, %c0_55], %134 {strides = array<i32>} : memref<1x8x32xf32, #tpu.memory_space<vmem>>, vector<1x8x32xf32>,
    return
  }
  func.func @transform_0(%arg0: i32) -> (i32, i32, i32) {
    %c0_i32 = arith.constant 0 : i32
    %c0_i32_0 = arith.constant 0 : i32
    %c0_i32_1 = arith.constant 0 : i32
    return %arg0, %c0_i32, %c0_i32_0 : i32, i32, i32
  }
  func.func @transform_1(%arg0: i32) -> (i32, i32) {
    %c0_i32 = arith.constant 0 : i32
    %c0_i32_0 = arith.constant 0 : i32
    %c0_i32_1 = arith.constant 0 : i32
    return %c0_i32, %c0_i32_0 : i32, i32
  }
  func.func @transform_2(%arg0: i32) -> (i32, i32) {
    %c0_i32 = arith.constant 0 : i32
    %c0_i32_0 = arith.constant 0 : i32
    %c0_i32_1 = arith.constant 0 : i32
    return %c0_i32, %c0_i32_0 : i32, i32
  }
  func.func @transform_3(%arg0: i32) -> (i32, i32) {
    %c0_i32 = arith.constant 0 : i32
    %c0_i32_0 = arith.constant 0 : i32
    %c0_i32_1 = arith.constant 0 : i32
    return %c0_i32, %c0_i32_0 : i32, i32
  }
  func.func @transform_4(%arg0: i32) -> (i32, i32) {
    %c0_i32 = arith.constant 0 : i32
    %c0_i32_0 = arith.constant 0 : i32
    %c0_i32_1 = arith.constant 0 : i32
    return %c0_i32, %c0_i32_0 : i32, i32
  }
  func.func @transform_5(%arg0: i32) -> (i32, i32) {
    %c0_i32 = arith.constant 0 : i32
    %c0_i32_0 = arith.constant 0 : i32
    %c0_i32_1 = arith.constant 0 : i32
    return %c0_i32, %c0_i32_0 : i32, i32
  }
  func.func @transform_6(%arg0: i32) -> (i32, i32) {
    %c0_i32 = arith.constant 0 : i32
    %c0_i32_0 = arith.constant 0 : i32
    %c0_i32_1 = arith.constant 0 : i32
    return %c0_i32, %c0_i32_0 : i32, i32
  }
  func.func @transform_7(%arg0: i32) -> (i32, i32) {
    %c0_i32 = arith.constant 0 : i32
    %c0_i32_0 = arith.constant 0 : i32
    %c0_i32_1 = arith.constant 0 : i32
    return %c0_i32, %c0_i32_0 : i32, i32
  }
  func.func @transform_8(%arg0: i32) -> (i32, i32) {
    %c0_i32 = arith.constant 0 : i32
    %c0_i32_0 = arith.constant 0 : i32
    %c0_i32_1 = arith.constant 0 : i32
    return %c0_i32, %c0_i32_0 : i32, i32
  }
  func.func @transform_9(%arg0: i32) -> (i32, i32) {
    %c0_i32 = arith.constant 0 : i32
    %c0_i32_0 = arith.constant 0 : i32
    %c0_i32_1 = arith.constant 0 : i32
    return %c0_i32, %c0_i32_0 : i32, i32
  }
  func.func @transform_10(%arg0: i32) -> (i32, i32) {
    %c0_i32 = arith.constant 0 : i32
    %c0_i32_0 = arith.constant 0 : i32
    %c0_i32_1 = arith.constant 0 : i32
    return %c0_i32, %c0_i32_0 : i32, i32
  }
  func.func @transform_11(%arg0: i32) -> (i32, i32) {
    %c0_i32 = arith.constant 0 : i32
    %c0_i32_0 = arith.constant 0 : i32
    %c0_i32_1 = arith.constant 0 : i32
    return %c0_i32, %c0_i32_0 : i32, i32
  }
  func.func @transform_12(%arg0: i32) -> (i32, i32) {
    %c0_i32 = arith.constant 0 : i32
    %c0_i32_0 = arith.constant 0 : i32
    %c0_i32_1 = arith.constant 0 : i32
    return %c0_i32, %c0_i32_0 : i32, i32
  }
  func.func @transform_13(%arg0: i32) -> (i32, i32, i32) {
    %c0_i32 = arith.constant 0 : i32
    %c0_i32_0 = arith.constant 0 : i32
    %c0_i32_1 = arith.constant 0 : i32
    return %arg0, %c0_i32, %c0_i32_0 : i32, i32, i32
  }
}

</mosaic_0001>

<llo_original>
// kernel: tpu_custom_call.1
$region0: #{tpu_custom_call.1}
  #allocation0 [shape = 'u32[]', space=smem, size = 0x4, offset = 0x4, fixed_abs, tag = 'smem constant byte address 0x4 - core index']
  #allocation1 [shape = 'u32[144,128]{1,0:T(1,128)}', space=vmem, size = 0x12000, scoped, tag = 'internal scratch']
  #allocation2 [shape = 'f32[8,32]{1,0:T(8,128)}', space=vmem, size = 0x1000, scoped, tag = 'scratch operand']
  %s0 = inlined_call_operand.vmem [shape: f32[2,8,32], index: 0, kind: input, shape index: {}]
  %s1 = inlined_call_operand.vmem [shape: f32[1,32], index: 1, kind: input, shape index: {}]
  %s2 = inlined_call_operand.vmem [shape: f32[1,32], index: 2, kind: input, shape index: {}]
  %s3 = inlined_call_operand.vmem [shape: f32[32,96], index: 3, kind: input, shape index: {}]
  %s4 = inlined_call_operand.vmem [shape: f32[1,96], index: 4, kind: input, shape index: {}]
  %s5 = inlined_call_operand.vmem [shape: f32[32,32], index: 5, kind: input, shape index: {}]
  %s6 = inlined_call_operand.vmem [shape: f32[1,32], index: 6, kind: input, shape index: {}]
  %s7 = inlined_call_operand.vmem [shape: f32[1,32], index: 7, kind: input, shape index: {}]
  %s8 = inlined_call_operand.vmem [shape: f32[1,32], index: 8, kind: input, shape index: {}]
  %s9 = inlined_call_operand.vmem [shape: f32[32,128], index: 9, kind: input, shape index: {}]
  %s10 = inlined_call_operand.vmem [shape: f32[1,128], index: 10, kind: input, shape index: {}]
  %s11 = inlined_call_operand.vmem [shape: f32[128,32], index: 11, kind: input, shape index: {}]
  %s12 = inlined_call_operand.vmem [shape: f32[1,32], index: 12, kind: input, shape index: {}]
  %s13 = inlined_call_operand.hbm [shape: f32[2,8,32], index: 13, kind: output, shape index: {}]
  %s14 = sld [smem:[#allocation0]]
  $region85: #{tpu_custom_call.1} parent=0
    _
  %s16 = ssub.s32 1, %s14
  %s17 = scalar_select 0, %s16, %s14
  $region1: #{tpu_custom_call.1} parent=0
    #allocation3 [shape = 'u8[8192]{0}', space=vmem, size = 0x2000, scoped, tag = 'output window, operand 0']
    #allocation4 [shape = 's32[2]{0}', space=sflag, size = 0x8, scoped, tag = 'scoped memory for tpu_custom_call.1']
    %18 = vsyncpa [#allocation4], 0
    %s19 = scalar_lea.sflag [#allocation4], 1
    %20 = vsyncpa %s19, 0
    loop: start=0, step=1, limit=4
    $region2: #{tpu_custom_call.1} parent=1 // loop_pre_header
      _
    $region3: #{tpu_custom_call.1} parent=1 // loop_header
      %s22 = sphi 0, %s26
      %p23 = scmp.ge.s32.totalorder %s22, 4
      %s32 = sphi 0, %s34
      %s35 = sphi 0, %s32
      %s36 = sphi 0, %s35
      %s52 = sphi 0, %s36
      %s56 = sphi 0, %s56
      %s58 = sphi 0, %s56
      %s59 = sphi 0, %s58
      %s73 = sphi 0, %s59
      %s77 = sphi 0, %s77
      %s79 = sphi 0, %s77
      %s80 = sphi 0, %s79
      %s94 = sphi 0, %s80
      %s98 = sphi 0, %s98
      %s100 = sphi 0, %s98
      %s101 = sphi 0, %s100
      %s115 = sphi 0, %s101
      %s119 = sphi 0, %s119
      %s121 = sphi 0, %s119
      %s122 = sphi 0, %s121
      %s136 = sphi 0, %s122
      %s140 = sphi 0, %s140
      %s142 = sphi 0, %s140
      %s143 = sphi 0, %s142
      %s157 = sphi 0, %s143
      %s161 = sphi 0, %s161
      %s163 = sphi 0, %s161
      %s164 = sphi 0, %s163
      %s178 = sphi 0, %s164
      %s182 = sphi 0, %s182
      %s184 = sphi 0, %s182
      %s185 = sphi 0, %s184
      %s199 = sphi 0, %s185
      %s203 = sphi 0, %s203
      %s205 = sphi 0, %s203
      %s206 = sphi 0, %s205
      %s220 = sphi 0, %s206
      %s224 = sphi 0, %s224
      %s226 = sphi 0, %s224
      %s227 = sphi 0, %s226
      %s241 = sphi 0, %s227
      %s245 = sphi 0, %s245
      %s247 = sphi 0, %s245
      %s248 = sphi 0, %s247
      %s262 = sphi 0, %s248
      %s266 = sphi 0, %s266
      %s268 = sphi 0, %s266
      %s269 = sphi 0, %s268
      %s283 = sphi 0, %s269
      %s287 = sphi 0, %s287
      %s289 = sphi 0, %s287
      %s290 = sphi 0, %s289
      %s304 = sphi 0, %s290
      %s310 = sphi 0, %s312
      %s313 = sphi 0, %s310
      %s314 = sphi 0, %s313
      %s330 = sphi 0, %s314
    $region4: #{tpu_custom_call.1} parent=1 // loop_header_branch
      %25 = sbr.rel (%p23) target = $region8
    $region5: #{tpu_custom_call.1} parent=1 // loop_body
      %s27 = ssub.s32 %s22, 1
      %s28 = ssub.s32 %s22, 2
      %s29 = sadd.s32 %s22, 1
      %s30 = ssub.s32 %s22, %s29
      %p31 = scmp.eq.s32.totalorder %s30, 0
      %s33 = sadd.s32 %s32, 1
      %s34 = scalar_select %p31, %s32, %s33
      %p37 = pneg %p31
      %p38 = scmp.eq.s32.totalorder %s22, 1
      %p39 = por %p37, %p38
      %p40 = scmp.ne.s32.totalorder %s32, %s35
      %p41 = scmp.eq.s32.totalorder %s22, 0
      %p42 = por %p40, %p41
      %p43 = scmp.ne.s32.totalorder %s32, %s35
      %p44 = scmp.eq.s32.totalorder %s27, 1
      %p45 = por %p43, %p44
      %p46 = scmp.ne.s32.totalorder %s35, %s36
      %p47 = scmp.eq.s32.totalorder %s27, 0
      %p48 = por %p46, %p47
      %p49 = scmp.ne.s32.totalorder %s35, %s36
      %p50 = scmp.eq.s32.totalorder %s28, 1
      %p51 = por %p49, %p50
      %p53 = scmp.ne.s32.totalorder %s36, %s52
      %p54 = scmp.eq.s32.totalorder %s28, 0
      %p55 = por %p53, %p54
      %s57 = sadd.s32 %s56, 1
      %p60 = scmp.eq.s32.totalorder %s22, 1
      %p61 = scmp.ne.s32.totalorder %s56, %s58
      %p62 = scmp.eq.s32.totalorder %s22, 0
      %p63 = por %p61, %p62
      %p64 = scmp.ne.s32.totalorder %s56, %s58
      %p65 = scmp.eq.s32.totalorder %s27, 1
      %p66 = por %p64, %p65
      %p67 = scmp.ne.s32.totalorder %s58, %s59
      %p68 = scmp.eq.s32.totalorder %s27, 0
      %p69 = por %p67, %p68
      %p70 = scmp.ne.s32.totalorder %s58, %s59
      %p71 = scmp.eq.s32.totalorder %s28, 1
      %p72 = por %p70, %p71
      %p74 = scmp.ne.s32.totalorder %s59, %s73
      %p75 = scmp.eq.s32.totalorder %s28, 0
      %p76 = por %p74, %p75
      %s78 = sadd.s32 %s77, 1
      %p81 = scmp.eq.s32.totalorder %s22, 1
      %p82 = scmp.ne.s32.totalorder %s77, %s79
      %p83 = scmp.eq.s32.totalorder %s22, 0
      %p84 = por %p82, %p83
      %p85 = scmp.ne.s32.totalorder %s77, %s79
      %p86 = scmp.eq.s32.totalorder %s27, 1
      %p87 = por %p85, %p86
      %p88 = scmp.ne.s32.totalorder %s79, %s80
      %p89 = scmp.eq.s32.totalorder %s27, 0
      %p90 = por %p88, %p89
      %p91 = scmp.ne.s32.totalorder %s79, %s80
      %p92 = scmp.eq.s32.totalorder %s28, 1
      %p93 = por %p91, %p92
      %p95 = scmp.ne.s32.totalorder %s80, %s94
      %p96 = scmp.eq.s32.totalorder %s28, 0
      %p97 = por %p95, %p96
      %s99 = sadd.s32 %s98, 1
      %p102 = scmp.eq.s32.totalorder %s22, 1
      %p103 = scmp.ne.s32.totalorder %s98, %s100
      %p104 = scmp.eq.s32.totalorder %s22, 0
      %p105 = por %p103, %p104
      %p106 = scmp.ne.s32.totalorder %s98, %s100
      %p107 = scmp.eq.s32.totalorder %s27, 1
      %p108 = por %p106, %p107
      %p109 = scmp.ne.s32.totalorder %s100, %s101
      %p110 = scmp.eq.s32.totalorder %s27, 0
      %p111 = por %p109, %p110
      %p112 = scmp.ne.s32.totalorder %s100, %s101
      %p113 = scmp.eq.s32.totalorder %s28, 1
      %p114 = por %p112, %p113
      %p116 = scmp.ne.s32.totalorder %s101, %s115
      %p117 = scmp.eq.s32.totalorder %s28, 0
      %p118 = por %p116, %p117
      %s120 = sadd.s32 %s119, 1
      %p123 = scmp.eq.s32.totalorder %s22, 1
      %p124 = scmp.ne.s32.totalorder %s119, %s121
      %p125 = scmp.eq.s32.totalorder %s22, 0
      %p126 = por %p124, %p125
      %p127 = scmp.ne.s32.totalorder %s119, %s121
      %p128 = scmp.eq.s32.totalorder %s27, 1
      %p129 = por %p127, %p128
      %p130 = scmp.ne.s32.totalorder %s121, %s122
      %p131 = scmp.eq.s32.totalorder %s27, 0
      %p132 = por %p130, %p131
      %p133 = scmp.ne.s32.totalorder %s121, %s122
      %p134 = scmp.eq.s32.totalorder %s28, 1
      %p135 = por %p133, %p134
      %p137 = scmp.ne.s32.totalorder %s122, %s136
      %p138 = scmp.eq.s32.totalorder %s28, 0
      %p139 = por %p137, %p138
      %s141 = sadd.s32 %s140, 1
      %p144 = scmp.eq.s32.totalorder %s22, 1
      %p145 = scmp.ne.s32.totalorder %s140, %s142
      %p146 = scmp.eq.s32.totalorder %s22, 0
      %p147 = por %p145, %p146
      %p148 = scmp.ne.s32.totalorder %s140, %s142
      %p149 = scmp.eq.s32.totalorder %s27, 1
      %p150 = por %p148, %p149
      %p151 = scmp.ne.s32.totalorder %s142, %s143
      %p152 = scmp.eq.s32.totalorder %s27, 0
      %p153 = por %p151, %p152
      %p154 = scmp.ne.s32.totalorder %s142, %s143
      %p155 = scmp.eq.s32.totalorder %s28, 1
      %p156 = por %p154, %p155
      %p158 = scmp.ne.s32.totalorder %s143, %s157
      %p159 = scmp.eq.s32.totalorder %s28, 0
      %p160 = por %p158, %p159
      %s162 = sadd.s32 %s161, 1
      %p165 = scmp.eq.s32.totalorder %s22, 1
      %p166 = scmp.ne.s32.totalorder %s161, %s163
      %p167 = scmp.eq.s32.totalorder %s22, 0
      %p168 = por %p166, %p167
      %p169 = scmp.ne.s32.totalorder %s161, %s163
      %p170 = scmp.eq.s32.totalorder %s27, 1
      %p171 = por %p169, %p170
      %p172 = scmp.ne.s32.totalorder %s163, %s164
      %p173 = scmp.eq.s32.totalorder %s27, 0
      %p174 = por %p172, %p173
      %p175 = scmp.ne.s32.totalorder %s163, %s164
      %p176 = scmp.eq.s32.totalorder %s28, 1
      %p177 = por %p175, %p176
      %p179 = scmp.ne.s32.totalorder %s164, %s178
      %p180 = scmp.eq.s32.totalorder %s28, 0
      %p181 = por %p179, %p180
      %s183 = sadd.s32 %s182, 1
      %p186 = scmp.eq.s32.totalorder %s22, 1
      %p187 = scmp.ne.s32.totalorder %s182, %s184
      %p188 = scmp.eq.s32.totalorder %s22, 0
      %p189 = por %p187, %p188
      %p190 = scmp.ne.s32.totalorder %s182, %s184
      %p191 = scmp.eq.s32.totalorder %s27, 1
      %p192 = por %p190, %p191
      %p193 = scmp.ne.s32.totalorder %s184, %s185
      %p194 = scmp.eq.s32.totalorder %s27, 0
      %p195 = por %p193, %p194
      %p196 = scmp.ne.s32.totalorder %s184, %s185
      %p197 = scmp.eq.s32.totalorder %s28, 1
      %p198 = por %p196, %p197
      %p200 = scmp.ne.s32.totalorder %s185, %s199
      %p201 = scmp.eq.s32.totalorder %s28, 0
      %p202 = por %p200, %p201
      %s204 = sadd.s32 %s203, 1
      %p207 = scmp.eq.s32.totalorder %s22, 1
      %p208 = scmp.ne.s32.totalorder %s203, %s205
      %p209 = scmp.eq.s32.totalorder %s22, 0
      %p210 = por %p208, %p209
      %p211 = scmp.ne.s32.totalorder %s203, %s205
      %p212 = scmp.eq.s32.totalorder %s27, 1
      %p213 = por %p211, %p212
      %p214 = scmp.ne.s32.totalorder %s205, %s206
      %p215 = scmp.eq.s32.totalorder %s27, 0
      %p216 = por %p214, %p215
      %p217 = scmp.ne.s32.totalorder %s205, %s206
      %p218 = scmp.eq.s32.totalorder %s28, 1
      %p219 = por %p217, %p218
      %p221 = scmp.ne.s32.totalorder %s206, %s220
      %p222 = scmp.eq.s32.totalorder %s28, 0
      %p223 = por %p221, %p222
      %s225 = sadd.s32 %s224, 1
      %p228 = scmp.eq.s32.totalorder %s22, 1
      %p229 = scmp.ne.s32.totalorder %s224, %s226
      %p230 = scmp.eq.s32.totalorder %s22, 0
      %p231 = por %p229, %p230
      %p232 = scmp.ne.s32.totalorder %s224, %s226
      %p233 = scmp.eq.s32.totalorder %s27, 1
      %p234 = por %p232, %p233
      %p235 = scmp.ne.s32.totalorder %s226, %s227
      %p236 = scmp.eq.s32.totalorder %s27, 0
      %p237 = por %p235, %p236
      %p238 = scmp.ne.s32.totalorder %s226, %s227
      %p239 = scmp.eq.s32.totalorder %s28, 1
      %p240 = por %p238, %p239
      %p242 = scmp.ne.s32.totalorder %s227, %s241
      %p243 = scmp.eq.s32.totalorder %s28, 0
      %p244 = por %p242, %p243
      %s246 = sadd.s32 %s245, 1
      %p249 = scmp.eq.s32.totalorder %s22, 1
      %p250 = scmp.ne.s32.totalorder %s245, %s247
      %p251 = scmp.eq.s32.totalorder %s22, 0
      %p252 = por %p250, %p251
      %p253 = scmp.ne.s32.totalorder %s245, %s247
      %p254 = scmp.eq.s32.totalorder %s27, 1
      %p255 = por %p253, %p254
      %p256 = scmp.ne.s32.totalorder %s247, %s248
      %p257 = scmp.eq.s32.totalorder %s27, 0
      %p258 = por %p256, %p257
      %p259 = scmp.ne.s32.totalorder %s247, %s248
      %p260 = scmp.eq.s32.totalorder %s28, 1
      %p261 = por %p259, %p260
      %p263 = scmp.ne.s32.totalorder %s248, %s262
      %p264 = scmp.eq.s32.totalorder %s28, 0
      %p265 = por %p263, %p264
      %s267 = sadd.s32 %s266, 1
      %p270 = scmp.eq.s32.totalorder %s22, 1
      %p271 = scmp.ne.s32.totalorder %s266, %s268
      %p272 = scmp.eq.s32.totalorder %s22, 0
      %p273 = por %p271, %p272
      %p274 = scmp.ne.s32.totalorder %s266, %s268
      %p275 = scmp.eq.s32.totalorder %s27, 1
      %p276 = por %p274, %p275
      %p277 = scmp.ne.s32.totalorder %s268, %s269
      %p278 = scmp.eq.s32.totalorder %s27, 0
      %p279 = por %p277, %p278
      %p280 = scmp.ne.s32.totalorder %s268, %s269
      %p281 = scmp.eq.s32.totalorder %s28, 1
      %p282 = por %p280, %p281
      %p284 = scmp.ne.s32.totalorder %s269, %s283
      %p285 = scmp.eq.s32.totalorder %s28, 0
      %p286 = por %p284, %p285
      %s288 = sadd.s32 %s287, 1
      %p291 = scmp.eq.s32.totalorder %s22, 1
      %p292 = scmp.ne.s32.totalorder %s287, %s289
      %p293 = scmp.eq.s32.totalorder %s22, 0
      %p294 = por %p292, %p293
      %p295 = scmp.ne.s32.totalorder %s287, %s289
      %p296 = scmp.eq.s32.totalorder %s27, 1
      %p297 = por %p295, %p296
      %p298 = scmp.ne.s32.totalorder %s289, %s290
      %p299 = scmp.eq.s32.totalorder %s27, 0
      %p300 = por %p298, %p299
      %p301 = scmp.ne.s32.totalorder %s289, %s290
      %p302 = scmp.eq.s32.totalorder %s28, 1
      %p303 = por %p301, %p302
      %p305 = scmp.ne.s32.totalorder %s290, %s304
      %p306 = scmp.eq.s32.totalorder %s28, 0
      %p307 = por %p305, %p306
      %s308 = ssub.s32 %s22, %s29
      %p309 = scmp.eq.s32.totalorder %s308, 0
      %s311 = sadd.s32 %s310, 1
      %s312 = scalar_select %p309, %s310, %s311
      %p315 = pneg %p309
      %p316 = scmp.eq.s32.totalorder %s22, 1
      %p317 = por %p315, %p316
      %p318 = scmp.ne.s32.totalorder %s310, %s313
      %p319 = scmp.eq.s32.totalorder %s22, 0
      %p320 = por %p318, %p319
      %p321 = scmp.ne.s32.totalorder %s310, %s313
      %p322 = scmp.eq.s32.totalorder %s27, 1
      %p323 = por %p321, %p322
      %p324 = scmp.ne.s32.totalorder %s313, %s314
      %p325 = scmp.eq.s32.totalorder %s27, 0
      %p326 = por %p324, %p325
      %p327 = scmp.ne.s32.totalorder %s313, %s314
      %p328 = scmp.eq.s32.totalorder %s28, 1
      %p329 = por %p327, %p328
      %p331 = scmp.ne.s32.totalorder %s314, %s330
      %p332 = scmp.eq.s32.totalorder %s28, 0
      %p333 = por %p331, %p332
      %p334 = scmp.le.s32.totalorder 1, %s22
      %p335 = scmp.lt.s32.totalorder %s22, 3
      %p336 = pnand %p334, %p335
      %p337 = pneg %p336
      // Predicated region
      $region9: #{tpu_custom_call.1} parent=5 // pred_check
        _
      $region10: #{tpu_custom_call.1} parent=5 // pred_check_branch
        %339 = sbr.rel (%p336) target = $region12
      $region11: #{tpu_custom_call.1} parent=5 // pred_region
        %s340 = ssub.s32 %s22, 1
        // Predicated region
        $region13: #{tpu_custom_call.1} parent=11 // pred_check
          %p341 = pneg %p69
        $region14: #{tpu_custom_call.1} parent=11 // pred_check_branch
          %343 = sbr.rel (%p341) target = $region16
        $region15: #{tpu_custom_call.1} parent=11 // pred_region
          _
        $region16: #{tpu_custom_call.1} parent=11 // pred_fallthru
          _
        // Predicated region
        $region17: #{tpu_custom_call.1} parent=11 // pred_check
          %p344 = pneg %p90
        $region18: #{tpu_custom_call.1} parent=11 // pred_check_branch
          %346 = sbr.rel (%p344) target = $region20
        $region19: #{tpu_custom_call.1} parent=11 // pred_region
          _
        $region20: #{tpu_custom_call.1} parent=11 // pred_fallthru
          _
        // Predicated region
        $region21: #{tpu_custom_call.1} parent=11 // pred_check
          %p347 = pneg %p111
        $region22: #{tpu_custom_call.1} parent=11 // pred_check_branch
          %349 = sbr.rel (%p347) target = $region24
        $region23: #{tpu_custom_call.1} parent=11 // pred_region
          _
        $region24: #{tpu_custom_call.1} parent=11 // pred_fallthru
          _
        // Predicated region
        $region25: #{tpu_custom_call.1} parent=11 // pred_check
          %p350 = pneg %p132
        $region26: #{tpu_custom_call.1} parent=11 // pred_check_branch
          %352 = sbr.rel (%p350) target = $region28
        $region27: #{tpu_custom_call.1} parent=11 // pred_region
          _
        $region28: #{tpu_custom_call.1} parent=11 // pred_fallthru
          _
        // Predicated region
        $region29: #{tpu_custom_call.1} parent=11 // pred_check
          %p353 = pneg %p153
        $region30: #{tpu_custom_call.1} parent=11 // pred_check_branch
          %355 = sbr.rel (%p353) target = $region32
        $region31: #{tpu_custom_call.1} parent=11 // pred_region
          _
        $region32: #{tpu_custom_call.1} parent=11 // pred_fallthru
          _
        // Predicated region
        $region33: #{tpu_custom_call.1} parent=11 // pred_check
          %p356 = pneg %p174
        $region34: #{tpu_custom_call.1} parent=11 // pred_check_branch
          %358 = sbr.rel (%p356) target = $region36
        $region35: #{tpu_custom_call.1} parent=11 // pred_region
          _
        $region36: #{tpu_custom_call.1} parent=11 // pred_fallthru
          _
        // Predicated region
        $region37: #{tpu_custom_call.1} parent=11 // pred_check
          %p359 = pneg %p195
        $region38: #{tpu_custom_call.1} parent=11 // pred_check_branch
          %361 = sbr.rel (%p359) target = $region40
        $region39: #{tpu_custom_call.1} parent=11 // pred_region
          _
        $region40: #{tpu_custom_call.1} parent=11 // pred_fallthru
          _
        // Predicated region
        $region41: #{tpu_custom_call.1} parent=11 // pred_check
          %p362 = pneg %p216
        $region42: #{tpu_custom_call.1} parent=11 // pred_check_branch
          %364 = sbr.rel (%p362) target = $region44
        $region43: #{tpu_custom_call.1} parent=11 // pred_region
          _
        $region44: #{tpu_custom_call.1} parent=11 // pred_fallthru
          _
        // Predicated region
        $region45: #{tpu_custom_call.1} parent=11 // pred_check
          %p365 = pneg %p237
        $region46: #{tpu_custom_call.1} parent=11 // pred_check_branch
          %367 = sbr.rel (%p365) target = $region48
        $region47: #{tpu_custom_call.1} parent=11 // pred_region
          _
        $region48: #{tpu_custom_call.1} parent=11 // pred_fallthru
          _
        // Predicated region
        $region49: #{tpu_custom_call.1} parent=11 // pred_check
          %p368 = pneg %p258
        $region50: #{tpu_custom_call.1} parent=11 // pred_check_branch
          %370 = sbr.rel (%p368) target = $region52
        $region51: #{tpu_custom_call.1} parent=11 // pred_region
          _
        $region52: #{tpu_custom_call.1} parent=11 // pred_fallthru
          _
        // Predicated region
        $region53: #{tpu_custom_call.1} parent=11 // pred_check
          %p371 = pneg %p279
        $region54: #{tpu_custom_call.1} parent=11 // pred_check_branch
          %373 = sbr.rel (%p371) target = $region56
        $region55: #{tpu_custom_call.1} parent=11 // pred_region
          _
        $region56: #{tpu_custom_call.1} parent=11 // pred_fallthru
          _
        // Predicated region
        $region57: #{tpu_custom_call.1} parent=11 // pred_check
          %p374 = pneg %p300
        $region58: #{tpu_custom_call.1} parent=11 // pred_check_branch
          %376 = sbr.rel (%p374) target = $region60
        $region59: #{tpu_custom_call.1} parent=11 // pred_region
          _
        $region60: #{tpu_custom_call.1} parent=11 // pred_fallthru
          _
      $region12: #{tpu_custom_call.1} parent=5 // pred_fallthru
        _
      %p377 = scmp.lt.s32.totalorder %s22, 2
      // Predicated region
      $region61: #{tpu_custom_call.1} parent=5 // pred_check
        %p378 = pneg %p377
      $region62: #{tpu_custom_call.1} parent=5 // pred_check_branch
        %380 = sbr.rel (%p378) target = $region64
      $region63: #{tpu_custom_call.1} parent=5 // pred_region
        // Predicated region
        $region65: #{tpu_custom_call.1} parent=63 // pred_check
          %p381 = pneg %p42
        $region66: #{tpu_custom_call.1} parent=63 // pred_check_branch
          %383 = sbr.rel (%p381) target = $region68
        $region67: #{tpu_custom_call.1} parent=63 // pred_region
          %p384 = scmp.lt.s32.totalorder %s22, 1
          %s385 = scalar_select %p384, %s22, 1
          %s386 = smul.addr %s385, 8
          %s387 = scalar_lea.vmem %s0, %s386
        $region68: #{tpu_custom_call.1} parent=63 // pred_fallthru
          _
      $region64: #{tpu_custom_call.1} parent=5 // pred_fallthru
        _
      %p388 = scmp.le.s32.totalorder 1, %s22
      %p389 = scmp.lt.s32.totalorder %s22, 3
      %p390 = pnand %p388, %p389
      %p391 = pneg %p390
      // Predicated region
      $region69: #{tpu_custom_call.1} parent=5 // pred_check
        _
      $region70: #{tpu_custom_call.1} parent=5 // pred_check_branch
        %393 = sbr.rel (%p390) target = $region72
      $region71: #{tpu_custom_call.1} parent=5 // pred_region
        %s394 = ssub.s32 %s22, 1
        %p395 = scmp.lt.s32.totalorder %s27, 1
        %s396 = scalar_select %p395, %s27, 1
        %s397 = smul.addr %s396, 8
        %s398 = scalar_lea.vmem %s0, %s397
        %p399 = pneg %p48
        %p400 = pneg %p45
        %p401 = pneg %p69
        %p402 = pneg %p66
        %p403 = pneg %p90
        %p404 = pneg %p87
        %p405 = pneg %p111
        %p406 = pneg %p108
        %p407 = pneg %p132
        %p408 = pneg %p129
        %p409 = pneg %p153
        %p410 = pneg %p150
        %p411 = pneg %p174
        %p412 = pneg %p171
        %p413 = pneg %p195
        %p414 = pneg %p192
        %p415 = pneg %p216
        %p416 = pneg %p213
        %p417 = pneg %p237
        %p418 = pneg %p234
        %p419 = pneg %p258
        %p420 = pneg %p255
        %p421 = pneg %p279
        %p422 = pneg %p276
        %p423 = pneg %p300
        %p424 = pneg %p297
        %p425 = pneg %p326
        %p426 = pneg %p323
        %s427 = sand.u32 %s313, 1
        %s428 = scalar_lea.sflag [#allocation4], %s427
        %s429 = sand.u32 %s313, 1
        %s430 = smul.addr %s429, 8
        %s431 = scalar_lea.vmem [#allocation3], %s430
        %p432 = scmp.lt.s32.totalorder %s27, 1
        %s433 = scalar_select %p432, %s27, 1
        %s434 = smul.addr %s433, 8
        %s435 = scalar_lea.vmem %s0, %s434
        %v436 = vld [vmem:[%s435] sm:$0xff]
        %v437 = vld [vmem:[%s1] sm:$0x1]
        %v438 = vld [vmem:[%s2] sm:$0x1]
        %vm439 = vcmask 261120
        %v440 = vsel %vm439, %v436, 0.0
        %441 = vadd.xlane.f32.xlu0 %v440
        %v442 = vpop.xlane.xlu0 %441
        %v443 = vrcp.pop 32.0
        %v444 = vmul.f32 %v442, %v443
        %v445 = vsub.f32 %v436, %v444
        %v446 = vmul.f32 %v445, %v445
        %v447 = vsel %vm439, %v446, 0.0
        %448 = vadd.xlane.f32.xlu0 %v447
        %v449 = vpop.xlane.xlu0 %448
        %v450 = vmul.f32 %v449, %v443
        %v451 = vadd.f32 %v450, 1e-05
        %v452 = vrsqrt.pop %v451
        %v453 = vmul.f32 %v445, %v452
        %v455 = vlaneseq
        %v456 = vshrl.u32 %v455, 7
        %v457 = vsub.s32 0, %v456
        %v458 = vrot.slane %v437, %v457
        %v460 = vmul.f32 %v453, %v458
        %v462 = vlaneseq
        %v463 = vshrl.u32 %v462, 7
        %v464 = vsub.s32 0, %v463
        %v465 = vrot.slane %v438, %v464
        %v467 = vadd.f32 %v460, %v465
        %v468 = vld [vmem:[%s3] sm:$0xff]
        %v469 = vld [vmem:[%s3 + $0x8] sm:$0xff]
        %v470 = vld [vmem:[%s3 + $0x10] sm:$0xff]
        %v471 = vld [vmem:[%s3 + $0x18] sm:$0xff]
        %v472 = vld [vmem:[%s4] sm:$0x1]
        %v474 = vlaneseq
        %v475 = vshrl.u32 %v474, 7
        %v476 = vsub.s32 0, %v475
        %v477 = vrot.slane %v472, %v476
        %v480 = vsel %vm439, %v467, 0
        %482 = vmatprep.subr.mxu0 0.0
        %483 = vmatpush1.msra.mxu0 %v468
        %484 = vmatprep.subr.mxu0 0.0
        %485 = vmatpush1.msra.mxu0 %v469
        %486 = vmatprep.subr.mxu0 0.0
        %487 = vmatpush1.msra.mxu0 %v470
        %488 = vmatprep.subr.mxu0 0.0
        %489 = vmatpush1.msra.mxu0 %v471
        %490 = vmatprep.subr.mxu0 0.0
        %491 = vmatpush1.msra.mxu0 0.0
        %492 = vmatprep.subr.mxu0 0.0
        %493 = vmatpush1.msra.mxu0 0.0
        %494 = vmatprep.subr.mxu0 0.0
        %495 = vmatpush1.msra.mxu0 0.0
        %496 = vmatprep.subr.mxu0 0.0
        %497 = vmatpush1.msra.mxu0 0.0
        %498 = vmatprep.subr.mxu0 0.0
        %499 = vmatpush1.msra.mxu0 0.0
        %500 = vmatprep.subr.mxu0 0.0
        %501 = vmatpush1.msra.mxu0 0.0
        %502 = vmatprep.subr.mxu0 0.0
        %503 = vmatpush1.msra.mxu0 0.0
        %504 = vmatprep.subr.mxu0 0.0
        %505 = vmatpush1.msra.mxu0 0.0
        %506 = vmatprep.subr.mxu0 0.0
        %507 = vmatpush1.msra.mxu0 0.0
        %508 = vmatprep.subr.mxu0 0.0
        %509 = vmatpush1.msra.mxu0 0.0
        %510 = vmatprep.subr.mxu0 0.0
        %511 = vmatpush1.msra.mxu0 0.0
        %512 = vmatprep.subr.mxu0 0.0
        %513 = vmatpush1.msra.mxu0 0.0
        %514 = vmatprep.subr.mxu0 0.0
        %515 = vmatpush1.msra.mxu0 0.0
        %516 = vmatprep.subr.mxu0 0.0
        %517 = vmatpush1.msra.mxu0 0.0
        %518 = vmatprep.subr.mxu0 0.0
        %519 = vmatpush1.msra.mxu0 0.0
        %520 = vmatprep.subr.mxu0 0.0
        %521 = vmatpush1.msra.mxu0 0.0
        %522 = vmatprep.subr.mxu0 0.0
        %523 = vmatpush1.msra.mxu0 0.0
        %524 = vmatprep.subr.mxu0 0.0
        %525 = vmatpush1.msra.mxu0 0.0
        %526 = vmatprep.subr.mxu0 0.0
        %527 = vmatpush1.msra.mxu0 0.0
        %528 = vmatprep.subr.mxu0 0.0
        %529 = vmatpush1.msra.mxu0 0.0
        %530 = vmatprep.subr.mxu0 0.0
        %531 = vmatpush1.msra.mxu0 0.0
        %532 = vmatprep.subr.mxu0 0.0
        %533 = vmatpush1.msra.mxu0 0.0
        %534 = vmatprep.subr.mxu0 0.0
        %535 = vmatpush1.msra.mxu0 0.0
        %536 = vmatprep.subr.mxu0 0.0
        %537 = vmatpush1.msra.mxu0 0.0
        %538 = vmatprep.subr.mxu0 0.0
        %539 = vmatpush1.msra.mxu0 0.0
        %540 = vmatprep.subr.mxu0 0.0
        %541 = vmatpush1.msra.mxu0 0.0
        %542 = vmatprep.subr.mxu0 0.0
        %543 = vmatpush1.msra.mxu0 0.0
        %544 = vmatprep.subr.mxu0 0.0
        %545 = vmatpush1.msra.mxu0 0.0
        %546 = vmatprep.mubr.f32.mxu0 0.0
        %547 = vmatmul.mubr.f32.gmra.mrb[0].mxu0 %v480
        %v548 = vpop.f32.mrb[0].mxu0
        %v549 = vadd.f32 %v477, %v548
        %v550 = vpop.f32.mrb[0].mxu0
        %551 = vdwg.mxu0
        %553 = vrot.lane.b32.xlu0 %v549, 120
        %v554 = vpop.permute.xlu0 %553
        %555 = vrot.lane.b32.xlu0 %v549, 112
        %v556 = vpop.permute.xlu0 %555
        %557 = vrot.lane.b32.xlu0 %v549, 104
        %v558 = vpop.permute.xlu0 %557
        %559 = vrot.lane.b32.xlu0 %v549, 96
        %v560 = vpop.permute.xlu0 %559
        %vm561 = vcmask 64512
        %v562 = vsel %vm561, %v549, 0
        %v564 = vsel %vm561, %v560, 0
        %566 = vmatprep.subr.mxu0 0.0
        %567 = vmatpush1.xpose.msra.mxu0 %v564
        %568 = vmatprep.subr.mxu0 0.0
        %569 = vmatpush1.xpose.msra.mxu0 0.0
        %570 = vmatprep.subr.mxu0 0.0
        %571 = vmatpush1.xpose.msra.mxu0 0.0
        %572 = vmatprep.subr.mxu0 0.0
        %573 = vmatpush1.xpose.msra.mxu0 0.0
        %574 = vmatprep.subr.mxu0 0.0
        %575 = vmatpush1.xpose.msra.mxu0 0.0
        %576 = vmatprep.subr.mxu0 0.0
        %577 = vmatpush1.xpose.msra.mxu0 0.0
        %578 = vmatprep.subr.mxu0 0.0
        %579 = vmatpush1.xpose.msra.mxu0 0.0
        %580 = vmatprep.subr.mxu0 0.0
        %581 = vmatpush1.xpose.msra.mxu0 0.0
        %582 = vmatprep.subr.mxu0 0.0
        %583 = vmatpush1.xpose.msra.mxu0 0.0
        %584 = vmatprep.subr.mxu0 0.0
        %585 = vmatpush1.xpose.msra.mxu0 0.0
        %586 = vmatprep.subr.mxu0 0.0
        %587 = vmatpush1.xpose.msra.mxu0 0.0
        %588 = vmatprep.subr.mxu0 0.0
        %589 = vmatpush1.xpose.msra.mxu0 0.0
        %590 = vmatprep.subr.mxu0 0.0
        %591 = vmatpush1.xpose.msra.mxu0 0.0
        %592 = vmatprep.subr.mxu0 0.0
        %593 = vmatpush1.xpose.msra.mxu0 0.0
        %594 = vmatprep.subr.mxu0 0.0
        %595 = vmatpush1.xpose.msra.mxu0 0.0
        %596 = vmatprep.subr.mxu0 0.0
        %597 = vmatpush1.xpose.msra.mxu0 0.0
        %598 = vmatprep.subr.mxu0 0.0
        %599 = vmatpush1.xpose.msra.mxu0 0.0
        %600 = vmatprep.subr.mxu0 0.0
        %601 = vmatpush1.xpose.msra.mxu0 0.0
        %602 = vmatprep.subr.mxu0 0.0
        %603 = vmatpush1.xpose.msra.mxu0 0.0
        %604 = vmatprep.subr.mxu0 0.0
        %605 = vmatpush1.xpose.msra.mxu0 0.0
        %606 = vmatprep.subr.mxu0 0.0
        %607 = vmatpush1.xpose.msra.mxu0 0.0
        %608 = vmatprep.subr.mxu0 0.0
        %609 = vmatpush1.xpose.msra.mxu0 0.0
        %610 = vmatprep.subr.mxu0 0.0
        %611 = vmatpush1.xpose.msra.mxu0 0.0
        %612 = vmatprep.subr.mxu0 0.0
        %613 = vmatpush1.xpose.msra.mxu0 0.0
        %614 = vmatprep.subr.mxu0 0.0
        %615 = vmatpush1.xpose.msra.mxu0 0.0
        %616 = vmatprep.subr.mxu0 0.0
        %617 = vmatpush1.xpose.msra.mxu0 0.0
        %618 = vmatprep.subr.mxu0 0.0
        %619 = vmatpush1.xpose.msra.mxu0 0.0
        %620 = vmatprep.subr.mxu0 0.0
        %621 = vmatpush1.xpose.msra.mxu0 0.0
        %622 = vmatprep.subr.mxu0 0.0
        %623 = vmatpush1.xpose.msra.mxu0 0.0
        %624 = vmatprep.subr.mxu0 0.0
        %625 = vmatpush1.xpose.msra.mxu0 0.0
        %626 = vmatprep.subr.mxu0 0.0
        %627 = vmatpush1.xpose.msra.mxu0 0.0
        %628 = vmatprep.subr.mxu0 0.0
        %629 = vmatpush1.xpose.msra.mxu0 0.0
        %630 = vmatprep.mubr.f32.mxu0 0.0
        %631 = vmatmul.mubr.f32.gmra.mrb[0].mxu0 %v562
        %v632 = vpop.f32.mrb[0].mxu0
        %v633 = vadd.f32 0.0, %v632
        %v634 = vpop.f32.mrb[0].mxu0
        %635 = vdwg.mxu0
        %636 = vrot.lane.b32.xlu0 %v554, 96
        %v637 = vpop.permute.xlu0 %636
        %v638 = vsel %vm561, %v554, 0
        %v640 = vsel %vm561, %v637, 0
        %642 = vmatprep.subr.mxu0 0.0
        %643 = vmatpush1.xpose.msra.mxu0 %v640
        %644 = vmatprep.subr.mxu0 0.0
        %645 = vmatpush1.xpose.msra.mxu0 0.0
        %646 = vmatprep.subr.mxu0 0.0
        %647 = vmatpush1.xpose.msra.mxu0 0.0
        %648 = vmatprep.subr.mxu0 0.0
        %649 = vmatpush1.xpose.msra.mxu0 0.0
        %650 = vmatprep.subr.mxu0 0.0
        %651 = vmatpush1.xpose.msra.mxu0 0.0
        %652 = vmatprep.subr.mxu0 0.0
        %653 = vmatpush1.xpose.msra.mxu0 0.0
        %654 = vmatprep.subr.mxu0 0.0
        %655 = vmatpush1.xpose.msra.mxu0 0.0
        %656 = vmatprep.subr.mxu0 0.0
        %657 = vmatpush1.xpose.msra.mxu0 0.0
        %658 = vmatprep.subr.mxu0 0.0
        %659 = vmatpush1.xpose.msra.mxu0 0.0
        %660 = vmatprep.subr.mxu0 0.0
        %661 = vmatpush1.xpose.msra.mxu0 0.0
        %662 = vmatprep.subr.mxu0 0.0
        %663 = vmatpush1.xpose.msra.mxu0 0.0
        %664 = vmatprep.subr.mxu0 0.0
        %665 = vmatpush1.xpose.msra.mxu0 0.0
        %666 = vmatprep.subr.mxu0 0.0
        %667 = vmatpush1.xpose.msra.mxu0 0.0
        %668 = vmatprep.subr.mxu0 0.0
        %669 = vmatpush1.xpose.msra.mxu0 0.0
        %670 = vmatprep.subr.mxu0 0.0
        %671 = vmatpush1.xpose.msra.mxu0 0.0
        %672 = vmatprep.subr.mxu0 0.0
        %673 = vmatpush1.xpose.msra.mxu0 0.0
        %674 = vmatprep.subr.mxu0 0.0
        %675 = vmatpush1.xpose.msra.mxu0 0.0
        %676 = vmatprep.subr.mxu0 0.0
        %677 = vmatpush1.xpose.msra.mxu0 0.0
        %678 = vmatprep.subr.mxu0 0.0
        %679 = vmatpush1.xpose.msra.mxu0 0.0
        %680 = vmatprep.subr.mxu0 0.0
        %681 = vmatpush1.xpose.msra.mxu0 0.0
        %682 = vmatprep.subr.mxu0 0.0
        %683 = vmatpush1.xpose.msra.mxu0 0.0
        %684 = vmatprep.subr.mxu0 0.0
        %685 = vmatpush1.xpose.msra.mxu0 0.0
        %686 = vmatprep.subr.mxu0 0.0
        %687 = vmatpush1.xpose.msra.mxu0 0.0
        %688 = vmatprep.subr.mxu0 0.0
        %689 = vmatpush1.xpose.msra.mxu0 0.0
        %690 = vmatprep.subr.mxu0 0.0
        %691 = vmatpush1.xpose.msra.mxu0 0.0
        %692 = vmatprep.subr.mxu0 0.0
        %693 = vmatpush1.xpose.msra.mxu0 0.0
        %694 = vmatprep.subr.mxu0 0.0
        %695 = vmatpush1.xpose.msra.mxu0 0.0
        %696 = vmatprep.subr.mxu0 0.0
        %697 = vmatpush1.xpose.msra.mxu0 0.0
        %698 = vmatprep.subr.mxu0 0.0
        %699 = vmatpush1.xpose.msra.mxu0 0.0
        %700 = vmatprep.subr.mxu0 0.0
        %701 = vmatpush1.xpose.msra.mxu0 0.0
        %702 = vmatprep.subr.mxu0 0.0
        %703 = vmatpush1.xpose.msra.mxu0 0.0
        %704 = vmatprep.subr.mxu0 0.0
        %705 = vmatpush1.xpose.msra.mxu0 0.0
        %706 = vmatprep.mubr.f32.mxu0 0.0
        %707 = vmatmul.mubr.f32.gmra.mrb[0].mxu0 %v638
        %v708 = vpop.f32.mrb[0].mxu0
        %v709 = vadd.f32 0.0, %v708
        %v710 = vpop.f32.mrb[0].mxu0
        %711 = vdwg.mxu0
        %712 = vrot.lane.b32.xlu0 %v556, 96
        %v713 = vpop.permute.xlu0 %712
        %v714 = vsel %vm561, %v556, 0
        %v716 = vsel %vm561, %v713, 0
        %718 = vmatprep.subr.mxu0 0.0
        %719 = vmatpush1.xpose.msra.mxu0 %v716
        %720 = vmatprep.subr.mxu0 0.0
        %721 = vmatpush1.xpose.msra.mxu0 0.0
        %722 = vmatprep.subr.mxu0 0.0
        %723 = vmatpush1.xpose.msra.mxu0 0.0
        %724 = vmatprep.subr.mxu0 0.0
        %725 = vmatpush1.xpose.msra.mxu0 0.0
        %726 = vmatprep.subr.mxu0 0.0
        %727 = vmatpush1.xpose.msra.mxu0 0.0
        %728 = vmatprep.subr.mxu0 0.0
        %729 = vmatpush1.xpose.msra.mxu0 0.0
        %730 = vmatprep.subr.mxu0 0.0
        %731 = vmatpush1.xpose.msra.mxu0 0.0
        %732 = vmatprep.subr.mxu0 0.0
        %733 = vmatpush1.xpose.msra.mxu0 0.0
        %734 = vmatprep.subr.mxu0 0.0
        %735 = vmatpush1.xpose.msra.mxu0 0.0
        %736 = vmatprep.subr.mxu0 0.0
        %737 = vmatpush1.xpose.msra.mxu0 0.0
        %738 = vmatprep.subr.mxu0 0.0
        %739 = vmatpush1.xpose.msra.mxu0 0.0
        %740 = vmatprep.subr.mxu0 0.0
        %741 = vmatpush1.xpose.msra.mxu0 0.0
        %742 = vmatprep.subr.mxu0 0.0
        %743 = vmatpush1.xpose.msra.mxu0 0.0
        %744 = vmatprep.subr.mxu0 0.0
        %745 = vmatpush1.xpose.msra.mxu0 0.0
        %746 = vmatprep.subr.mxu0 0.0
        %747 = vmatpush1.xpose.msra.mxu0 0.0
        %748 = vmatprep.subr.mxu0 0.0
        %749 = vmatpush1.xpose.msra.mxu0 0.0
        %750 = vmatprep.subr.mxu0 0.0
        %751 = vmatpush1.xpose.msra.mxu0 0.0
        %752 = vmatprep.subr.mxu0 0.0
        %753 = vmatpush1.xpose.msra.mxu0 0.0
        %754 = vmatprep.subr.mxu0 0.0
        %755 = vmatpush1.xpose.msra.mxu0 0.0
        %756 = vmatprep.subr.mxu0 0.0
        %757 = vmatpush1.xpose.msra.mxu0 0.0
        %758 = vmatprep.subr.mxu0 0.0
        %759 = vmatpush1.xpose.msra.mxu0 0.0
        %760 = vmatprep.subr.mxu0 0.0
        %761 = vmatpush1.xpose.msra.mxu0 0.0
        %762 = vmatprep.subr.mxu0 0.0
        %763 = vmatpush1.xpose.msra.mxu0 0.0
        %764 = vmatprep.subr.mxu0 0.0
        %765 = vmatpush1.xpose.msra.mxu0 0.0
        %766 = vmatprep.subr.mxu0 0.0
        %767 = vmatpush1.xpose.msra.mxu0 0.0
        %768 = vmatprep.subr.mxu0 0.0
        %769 = vmatpush1.xpose.msra.mxu0 0.0
        %770 = vmatprep.subr.mxu0 0.0
        %771 = vmatpush1.xpose.msra.mxu0 0.0
        %772 = vmatprep.subr.mxu0 0.0
        %773 = vmatpush1.xpose.msra.mxu0 0.0
        %774 = vmatprep.subr.mxu0 0.0
        %775 = vmatpush1.xpose.msra.mxu0 0.0
        %776 = vmatprep.subr.mxu0 0.0
        %777 = vmatpush1.xpose.msra.mxu0 0.0
        %778 = vmatprep.subr.mxu0 0.0
        %779 = vmatpush1.xpose.msra.mxu0 0.0
        %780 = vmatprep.subr.mxu0 0.0
        %781 = vmatpush1.xpose.msra.mxu0 0.0
        %782 = vmatprep.mubr.f32.mxu0 0.0
        %783 = vmatmul.mubr.f32.gmra.mrb[0].mxu0 %v714
        %v784 = vpop.f32.mrb[0].mxu0
        %v785 = vadd.f32 0.0, %v784
        %v786 = vpop.f32.mrb[0].mxu0
        %787 = vdwg.mxu0
        %788 = vrot.lane.b32.xlu0 %v558, 96
        %v789 = vpop.permute.xlu0 %788
        %v790 = vsel %vm561, %v558, 0
        %v792 = vsel %vm561, %v789, 0
        %794 = vmatprep.subr.mxu0 0.0
        %795 = vmatpush1.xpose.msra.mxu0 %v792
        %796 = vmatprep.subr.mxu0 0.0
        %797 = vmatpush1.xpose.msra.mxu0 0.0
        %798 = vmatprep.subr.mxu0 0.0
        %799 = vmatpush1.xpose.msra.mxu0 0.0
        %800 = vmatprep.subr.mxu0 0.0
        %801 = vmatpush1.xpose.msra.mxu0 0.0
        %802 = vmatprep.subr.mxu0 0.0
        %803 = vmatpush1.xpose.msra.mxu0 0.0
        %804 = vmatprep.subr.mxu0 0.0
        %805 = vmatpush1.xpose.msra.mxu0 0.0
        %806 = vmatprep.subr.mxu0 0.0
        %807 = vmatpush1.xpose.msra.mxu0 0.0
        %808 = vmatprep.subr.mxu0 0.0
        %809 = vmatpush1.xpose.msra.mxu0 0.0
        %810 = vmatprep.subr.mxu0 0.0
        %811 = vmatpush1.xpose.msra.mxu0 0.0
        %812 = vmatprep.subr.mxu0 0.0
        %813 = vmatpush1.xpose.msra.mxu0 0.0
        %814 = vmatprep.subr.mxu0 0.0
        %815 = vmatpush1.xpose.msra.mxu0 0.0
        %816 = vmatprep.subr.mxu0 0.0
        %817 = vmatpush1.xpose.msra.mxu0 0.0
        %818 = vmatprep.subr.mxu0 0.0
        %819 = vmatpush1.xpose.msra.mxu0 0.0
        %820 = vmatprep.subr.mxu0 0.0
        %821 = vmatpush1.xpose.msra.mxu0 0.0
        %822 = vmatprep.subr.mxu0 0.0
        %823 = vmatpush1.xpose.msra.mxu0 0.0
        %824 = vmatprep.subr.mxu0 0.0
        %825 = vmatpush1.xpose.msra.mxu0 0.0
        %826 = vmatprep.subr.mxu0 0.0
        %827 = vmatpush1.xpose.msra.mxu0 0.0
        %828 = vmatprep.subr.mxu0 0.0
        %829 = vmatpush1.xpose.msra.mxu0 0.0
        %830 = vmatprep.subr.mxu0 0.0
        %831 = vmatpush1.xpose.msra.mxu0 0.0
        %832 = vmatprep.subr.mxu0 0.0
        %833 = vmatpush1.xpose.msra.mxu0 0.0
        %834 = vmatprep.subr.mxu0 0.0
        %835 = vmatpush1.xpose.msra.mxu0 0.0
        %836 = vmatprep.subr.mxu0 0.0
        %837 = vmatpush1.xpose.msra.mxu0 0.0
        %838 = vmatprep.subr.mxu0 0.0
        %839 = vmatpush1.xpose.msra.mxu0 0.0
        %840 = vmatprep.subr.mxu0 0.0
        %841 = vmatpush1.xpose.msra.mxu0 0.0
        %842 = vmatprep.subr.mxu0 0.0
        %843 = vmatpush1.xpose.msra.mxu0 0.0
        %844 = vmatprep.subr.mxu0 0.0
        %845 = vmatpush1.xpose.msra.mxu0 0.0
        %846 = vmatprep.subr.mxu0 0.0
        %847 = vmatpush1.xpose.msra.mxu0 0.0
        %848 = vmatprep.subr.mxu0 0.0
        %849 = vmatpush1.xpose.msra.mxu0 0.0
        %850 = vmatprep.subr.mxu0 0.0
        %851 = vmatpush1.xpose.msra.mxu0 0.0
        %852 = vmatprep.subr.mxu0 0.0
        %853 = vmatpush1.xpose.msra.mxu0 0.0
        %854 = vmatprep.subr.mxu0 0.0
        %855 = vmatpush1.xpose.msra.mxu0 0.0
        %856 = vmatprep.subr.mxu0 0.0
        %857 = vmatpush1.xpose.msra.mxu0 0.0
        %858 = vmatprep.mubr.f32.mxu0 0.0
        %859 = vmatmul.mubr.f32.gmra.mrb[0].mxu0 %v790
        %v860 = vpop.f32.mrb[0].mxu0
        %v861 = vadd.f32 0.0, %v860
        %v862 = vpop.f32.mrb[0].mxu0
        %863 = vdwg.mxu0
        %v864 = vsel %vm561, %v633, -inf
        %865 = vmax.xlane.f32.xlu0 %v864
        %v866 = vpop.xlane.xlu0 %865
        %v867 = vsel %vm561, %v709, -inf
        %868 = vmax.xlane.f32.xlu0 %v867
        %v869 = vpop.xlane.xlu0 %868
        %v870 = vsel %vm561, %v785, -inf
        %871 = vmax.xlane.f32.xlu0 %v870
        %v872 = vpop.xlane.xlu0 %871
        %v873 = vsel %vm561, %v861, -inf
        %874 = vmax.xlane.f32.xlu0 %v873
        %v875 = vpop.xlane.xlu0 %874
        %v876 = vsub.f32 %v633, %v866
        %v877 = vsub.f32 %v709, %v869
        %v878 = vsub.f32 %v785, %v872
        %v879 = vsub.f32 %v861, %v875
        %v880 = vmul.f32 %v876, 1.442695
        %v881 = vpow.pop %v880
        %v882 = vmul.f32 %v877, 1.442695
        %v883 = vpow.pop %v882
        %v884 = vmul.f32 %v878, 1.442695
        %v885 = vpow.pop %v884
        %v886 = vmul.f32 %v879, 1.442695
        %v887 = vpow.pop %v886
        %v888 = vsel %vm561, %v881, 0.0
        %889 = vadd.xlane.f32.xlu0 %v888
        %v890 = vpop.xlane.xlu0 %889
        %v891 = vsel %vm561, %v883, 0.0
        %892 = vadd.xlane.f32.xlu0 %v891
        %v893 = vpop.xlane.xlu0 %892
        %v894 = vsel %vm561, %v885, 0.0
        %895 = vadd.xlane.f32.xlu0 %v894
        %v896 = vpop.xlane.xlu0 %895
        %v897 = vsel %vm561, %v887, 0.0
        %898 = vadd.xlane.f32.xlu0 %v897
        %v899 = vpop.xlane.xlu0 %898
        %v900 = vrcp.pop %v890
        %v901 = vrcp.pop %v893
        %v902 = vrcp.pop %v896
        %v903 = vrcp.pop %v899
        %v904 = vmul.f32 %v881, %v900
        %v905 = vmul.f32 %v883, %v901
        %v906 = vmul.f32 %v885, %v902
        %v907 = vmul.f32 %v887, %v903
        %908 = vrot.lane.b32.xlu0 %v549, 64
        %v909 = vpop.permute.xlu0 %908
        %v912 = vsel %vm561, %v904, 0
        %914 = vmatprep.subr.mxu0 0.0
        %915 = vmatpush1.msra.mxu0 %v909
        %916 = vmatprep.subr.mxu0 0.0
        %917 = vmatpush1.msra.mxu0 0.0
        %918 = vmatprep.subr.mxu0 0.0
        %919 = vmatpush1.msra.mxu0 0.0
        %920 = vmatprep.subr.mxu0 0.0
        %921 = vmatpush1.msra.mxu0 0.0
        %922 = vmatprep.subr.mxu0 0.0
        %923 = vmatpush1.msra.mxu0 0.0
        %924 = vmatprep.subr.mxu0 0.0
        %925 = vmatpush1.msra.mxu0 0.0
        %926 = vmatprep.subr.mxu0 0.0
        %927 = vmatpush1.msra.mxu0 0.0
        %928 = vmatprep.subr.mxu0 0.0
        %929 = vmatpush1.msra.mxu0 0.0
        %930 = vmatprep.subr.mxu0 0.0
        %931 = vmatpush1.msra.mxu0 0.0
        %932 = vmatprep.subr.mxu0 0.0
        %933 = vmatpush1.msra.mxu0 0.0
        %934 = vmatprep.subr.mxu0 0.0
        %935 = vmatpush1.msra.mxu0 0.0
        %936 = vmatprep.subr.mxu0 0.0
        %937 = vmatpush1.msra.mxu0 0.0
        %938 = vmatprep.subr.mxu0 0.0
        %939 = vmatpush1.msra.mxu0 0.0
        %940 = vmatprep.subr.mxu0 0.0
        %941 = vmatpush1.msra.mxu0 0.0
        %942 = vmatprep.subr.mxu0 0.0
        %943 = vmatpush1.msra.mxu0 0.0
        %944 = vmatprep.subr.mxu0 0.0
        %945 = vmatpush1.msra.mxu0 0.0
        %946 = vmatprep.subr.mxu0 0.0
        %947 = vmatpush1.msra.mxu0 0.0
        %948 = vmatprep.subr.mxu0 0.0
        %949 = vmatpush1.msra.mxu0 0.0
        %950 = vmatprep.subr.mxu0 0.0
        %951 = vmatpush1.msra.mxu0 0.0
        %952 = vmatprep.subr.mxu0 0.0
        %953 = vmatpush1.msra.mxu0 0.0
        %954 = vmatprep.subr.mxu0 0.0
        %955 = vmatpush1.msra.mxu0 0.0
        %956 = vmatprep.subr.mxu0 0.0
        %957 = vmatpush1.msra.mxu0 0.0
        %958 = vmatprep.subr.mxu0 0.0
        %959 = vmatpush1.msra.mxu0 0.0
        %960 = vmatprep.subr.mxu0 0.0
        %961 = vmatpush1.msra.mxu0 0.0
        %962 = vmatprep.subr.mxu0 0.0
        %963 = vmatpush1.msra.mxu0 0.0
        %964 = vmatprep.subr.mxu0 0.0
        %965 = vmatpush1.msra.mxu0 0.0
        %966 = vmatprep.subr.mxu0 0.0
        %967 = vmatpush1.msra.mxu0 0.0
        %968 = vmatprep.subr.mxu0 0.0
        %969 = vmatpush1.msra.mxu0 0.0
        %970 = vmatprep.subr.mxu0 0.0
        %971 = vmatpush1.msra.mxu0 0.0
        %972 = vmatprep.subr.mxu0 0.0
        %973 = vmatpush1.msra.mxu0 0.0
        %974 = vmatprep.subr.mxu0 0.0
        %975 = vmatpush1.msra.mxu0 0.0
        %976 = vmatprep.subr.mxu0 0.0
        %977 = vmatpush1.msra.mxu0 0.0
        %978 = vmatprep.mubr.f32.mxu0 0.0
        %979 = vmatmul.mubr.f32.gmra.mrb[0].mxu0 %v912
        %v980 = vpop.f32.mrb[0].mxu0
        %v981 = vadd.f32 0.0, %v980
        %v982 = vpop.f32.mrb[0].mxu0
        %983 = vdwg.mxu0
        %984 = vrot.lane.b32.xlu0 %v554, 64
        %v985 = vpop.permute.xlu0 %984
        %v988 = vsel %vm561, %v905, 0
        %990 = vmatprep.subr.mxu0 0.0
        %991 = vmatpush1.msra.mxu0 %v985
        %992 = vmatprep.subr.mxu0 0.0
        %993 = vmatpush1.msra.mxu0 0.0
        %994 = vmatprep.subr.mxu0 0.0
        %995 = vmatpush1.msra.mxu0 0.0
        %996 = vmatprep.subr.mxu0 0.0
        %997 = vmatpush1.msra.mxu0 0.0
        %998 = vmatprep.subr.mxu0 0.0
        %999 = vmatpush1.msra.mxu0 0.0
        %1000 = vmatprep.subr.mxu0 0.0
        %1001 = vmatpush1.msra.mxu0 0.0
        %1002 = vmatprep.subr.mxu0 0.0
        %1003 = vmatpush1.msra.mxu0 0.0
        %1004 = vmatprep.subr.mxu0 0.0
        %1005 = vmatpush1.msra.mxu0 0.0
        %1006 = vmatprep.subr.mxu0 0.0
        %1007 = vmatpush1.msra.mxu0 0.0
        %1008 = vmatprep.subr.mxu0 0.0
        %1009 = vmatpush1.msra.mxu0 0.0
        %1010 = vmatprep.subr.mxu0 0.0
        %1011 = vmatpush1.msra.mxu0 0.0
        %1012 = vmatprep.subr.mxu0 0.0
        %1013 = vmatpush1.msra.mxu0 0.0
        %1014 = vmatprep.subr.mxu0 0.0
        %1015 = vmatpush1.msra.mxu0 0.0
        %1016 = vmatprep.subr.mxu0 0.0
        %1017 = vmatpush1.msra.mxu0 0.0
        %1018 = vmatprep.subr.mxu0 0.0
        %1019 = vmatpush1.msra.mxu0 0.0
        %1020 = vmatprep.subr.mxu0 0.0
        %1021 = vmatpush1.msra.mxu0 0.0
        %1022 = vmatprep.subr.mxu0 0.0
        %1023 = vmatpush1.msra.mxu0 0.0
        %1024 = vmatprep.subr.mxu0 0.0
        %1025 = vmatpush1.msra.mxu0 0.0
        %1026 = vmatprep.subr.mxu0 0.0
        %1027 = vmatpush1.msra.mxu0 0.0
        %1028 = vmatprep.subr.mxu0 0.0
        %1029 = vmatpush1.msra.mxu0 0.0
        %1030 = vmatprep.subr.mxu0 0.0
        %1031 = vmatpush1.msra.mxu0 0.0
        %1032 = vmatprep.subr.mxu0 0.0
        %1033 = vmatpush1.msra.mxu0 0.0
        %1034 = vmatprep.subr.mxu0 0.0
        %1035 = vmatpush1.msra.mxu0 0.0
        %1036 = vmatprep.subr.mxu0 0.0
        %1037 = vmatpush1.msra.mxu0 0.0
        %1038 = vmatprep.subr.mxu0 0.0
        %1039 = vmatpush1.msra.mxu0 0.0
        %1040 = vmatprep.subr.mxu0 0.0
        %1041 = vmatpush1.msra.mxu0 0.0
        %1042 = vmatprep.subr.mxu0 0.0
        %1043 = vmatpush1.msra.mxu0 0.0
        %1044 = vmatprep.subr.mxu0 0.0
        %1045 = vmatpush1.msra.mxu0 0.0
        %1046 = vmatprep.subr.mxu0 0.0
        %1047 = vmatpush1.msra.mxu0 0.0
        %1048 = vmatprep.subr.mxu0 0.0
        %1049 = vmatpush1.msra.mxu0 0.0
        %1050 = vmatprep.subr.mxu0 0.0
        %1051 = vmatpush1.msra.mxu0 0.0
        %1052 = vmatprep.subr.mxu0 0.0
        %1053 = vmatpush1.msra.mxu0 0.0
        %1054 = vmatprep.mubr.f32.mxu0 0.0
        %1055 = vmatmul.mubr.f32.gmra.mrb[0].mxu0 %v988
        %v1056 = vpop.f32.mrb[0].mxu0
        %v1057 = vadd.f32 0.0, %v1056
        %v1058 = vpop.f32.mrb[0].mxu0
        %1059 = vdwg.mxu0
        %1060 = vrot.lane.b32.xlu0 %v556, 64
        %v1061 = vpop.permute.xlu0 %1060
        %v1064 = vsel %vm561, %v906, 0
        %1066 = vmatprep.subr.mxu0 0.0
        %1067 = vmatpush1.msra.mxu0 %v1061
        %1068 = vmatprep.subr.mxu0 0.0
        %1069 = vmatpush1.msra.mxu0 0.0
        %1070 = vmatprep.subr.mxu0 0.0
        %1071 = vmatpush1.msra.mxu0 0.0
        %1072 = vmatprep.subr.mxu0 0.0
        %1073 = vmatpush1.msra.mxu0 0.0
        %1074 = vmatprep.subr.mxu0 0.0
        %1075 = vmatpush1.msra.mxu0 0.0
        %1076 = vmatprep.subr.mxu0 0.0
        %1077 = vmatpush1.msra.mxu0 0.0
        %1078 = vmatprep.subr.mxu0 0.0
        %1079 = vmatpush1.msra.mxu0 0.0
        %1080 = vmatprep.subr.mxu0 0.0
        %1081 = vmatpush1.msra.mxu0 0.0
        %1082 = vmatprep.subr.mxu0 0.0
        %1083 = vmatpush1.msra.mxu0 0.0
        %1084 = vmatprep.subr.mxu0 0.0
        %1085 = vmatpush1.msra.mxu0 0.0
        %1086 = vmatprep.subr.mxu0 0.0
        %1087 = vmatpush1.msra.mxu0 0.0
        %1088 = vmatprep.subr.mxu0 0.0
        %1089 = vmatpush1.msra.mxu0 0.0
        %1090 = vmatprep.subr.mxu0 0.0
        %1091 = vmatpush1.msra.mxu0 0.0
        %1092 = vmatprep.subr.mxu0 0.0
        %1093 = vmatpush1.msra.mxu0 0.0
        %1094 = vmatprep.subr.mxu0 0.0
        %1095 = vmatpush1.msra.mxu0 0.0
        %1096 = vmatprep.subr.mxu0 0.0
        %1097 = vmatpush1.msra.mxu0 0.0
        %1098 = vmatprep.subr.mxu0 0.0
        %1099 = vmatpush1.msra.mxu0 0.0
        %1100 = vmatprep.subr.mxu0 0.0
        %1101 = vmatpush1.msra.mxu0 0.0
        %1102 = vmatprep.subr.mxu0 0.0
        %1103 = vmatpush1.msra.mxu0 0.0
        %1104 = vmatprep.subr.mxu0 0.0
        %1105 = vmatpush1.msra.mxu0 0.0
        %1106 = vmatprep.subr.mxu0 0.0
        %1107 = vmatpush1.msra.mxu0 0.0
        %1108 = vmatprep.subr.mxu0 0.0
        %1109 = vmatpush1.msra.mxu0 0.0
        %1110 = vmatprep.subr.mxu0 0.0
        %1111 = vmatpush1.msra.mxu0 0.0
        %1112 = vmatprep.subr.mxu0 0.0
        %1113 = vmatpush1.msra.mxu0 0.0
        %1114 = vmatprep.subr.mxu0 0.0
        %1115 = vmatpush1.msra.mxu0 0.0
        %1116 = vmatprep.subr.mxu0 0.0
        %1117 = vmatpush1.msra.mxu0 0.0
        %1118 = vmatprep.subr.mxu0 0.0
        %1119 = vmatpush1.msra.mxu0 0.0
        %1120 = vmatprep.subr.mxu0 0.0
        %1121 = vmatpush1.msra.mxu0 0.0
        %1122 = vmatprep.subr.mxu0 0.0
        %1123 = vmatpush1.msra.mxu0 0.0
        %1124 = vmatprep.subr.mxu0 0.0
        %1125 = vmatpush1.msra.mxu0 0.0
        %1126 = vmatprep.subr.mxu0 0.0
        %1127 = vmatpush1.msra.mxu0 0.0
        %1128 = vmatprep.subr.mxu0 0.0
        %1129 = vmatpush1.msra.mxu0 0.0
        %1130 = vmatprep.mubr.f32.mxu0 0.0
        %1131 = vmatmul.mubr.f32.gmra.mrb[0].mxu0 %v1064
        %v1132 = vpop.f32.mrb[0].mxu0
        %v1133 = vadd.f32 0.0, %v1132
        %v1134 = vpop.f32.mrb[0].mxu0
        %1135 = vdwg.mxu0
        %1136 = vrot.lane.b32.xlu0 %v558, 64
        %v1137 = vpop.permute.xlu0 %1136
        %v1140 = vsel %vm561, %v907, 0
        %1142 = vmatprep.subr.mxu0 0.0
        %1143 = vmatpush1.msra.mxu0 %v1137
        %1144 = vmatprep.subr.mxu0 0.0
        %1145 = vmatpush1.msra.mxu0 0.0
        %1146 = vmatprep.subr.mxu0 0.0
        %1147 = vmatpush1.msra.mxu0 0.0
        %1148 = vmatprep.subr.mxu0 0.0
        %1149 = vmatpush1.msra.mxu0 0.0
        %1150 = vmatprep.subr.mxu0 0.0
        %1151 = vmatpush1.msra.mxu0 0.0
        %1152 = vmatprep.subr.mxu0 0.0
        %1153 = vmatpush1.msra.mxu0 0.0
        %1154 = vmatprep.subr.mxu0 0.0
        %1155 = vmatpush1.msra.mxu0 0.0
        %1156 = vmatprep.subr.mxu0 0.0
        %1157 = vmatpush1.msra.mxu0 0.0
        %1158 = vmatprep.subr.mxu0 0.0
        %1159 = vmatpush1.msra.mxu0 0.0
        %1160 = vmatprep.subr.mxu0 0.0
        %1161 = vmatpush1.msra.mxu0 0.0
        %1162 = vmatprep.subr.mxu0 0.0
        %1163 = vmatpush1.msra.mxu0 0.0
        %1164 = vmatprep.subr.mxu0 0.0
        %1165 = vmatpush1.msra.mxu0 0.0
        %1166 = vmatprep.subr.mxu0 0.0
        %1167 = vmatpush1.msra.mxu0 0.0
        %1168 = vmatprep.subr.mxu0 0.0
        %1169 = vmatpush1.msra.mxu0 0.0
        %1170 = vmatprep.subr.mxu0 0.0
        %1171 = vmatpush1.msra.mxu0 0.0
        %1172 = vmatprep.subr.mxu0 0.0
        %1173 = vmatpush1.msra.mxu0 0.0
        %1174 = vmatprep.subr.mxu0 0.0
        %1175 = vmatpush1.msra.mxu0 0.0
        %1176 = vmatprep.subr.mxu0 0.0
        %1177 = vmatpush1.msra.mxu0 0.0
        %1178 = vmatprep.subr.mxu0 0.0
        %1179 = vmatpush1.msra.mxu0 0.0
        %1180 = vmatprep.subr.mxu0 0.0
        %1181 = vmatpush1.msra.mxu0 0.0
        %1182 = vmatprep.subr.mxu0 0.0
        %1183 = vmatpush1.msra.mxu0 0.0
        %1184 = vmatprep.subr.mxu0 0.0
        %1185 = vmatpush1.msra.mxu0 0.0
        %1186 = vmatprep.subr.mxu0 0.0
        %1187 = vmatpush1.msra.mxu0 0.0
        %1188 = vmatprep.subr.mxu0 0.0
        %1189 = vmatpush1.msra.mxu0 0.0
        %1190 = vmatprep.subr.mxu0 0.0
        %1191 = vmatpush1.msra.mxu0 0.0
        %1192 = vmatprep.subr.mxu0 0.0
        %1193 = vmatpush1.msra.mxu0 0.0
        %1194 = vmatprep.subr.mxu0 0.0
        %1195 = vmatpush1.msra.mxu0 0.0
        %1196 = vmatprep.subr.mxu0 0.0
        %1197 = vmatpush1.msra.mxu0 0.0
        %1198 = vmatprep.subr.mxu0 0.0
        %1199 = vmatpush1.msra.mxu0 0.0
        %1200 = vmatprep.subr.mxu0 0.0
        %1201 = vmatpush1.msra.mxu0 0.0
        %1202 = vmatprep.subr.mxu0 0.0
        %1203 = vmatpush1.msra.mxu0 0.0
        %1204 = vmatprep.subr.mxu0 0.0
        %1205 = vmatpush1.msra.mxu0 0.0
        %1206 = vmatprep.mubr.f32.mxu0 0.0
        %1207 = vmatmul.mubr.f32.gmra.mrb[0].mxu0 %v1140
        %v1208 = vpop.f32.mrb[0].mxu0
        %v1209 = vadd.f32 0.0, %v1208
        %v1210 = vpop.f32.mrb[0].mxu0
        %1211 = vdwg.mxu0
        %1213 = vrot.lane.b32.xlu0 %v1057, 8
        %v1214 = vpop.permute.xlu0 %1213
        %1217 = vrot.lane.b32.xlu0 %v1133, 16
        %v1218 = vpop.permute.xlu0 %1217
        %1221 = vrot.lane.b32.xlu0 %v1209, 24
        %v1222 = vpop.permute.xlu0 %1221
        %v1224 = vsel %vm561, %v981, %v1214
        %vm1225 = vcmask 130048
        %v1226 = vsel %vm1225, %v1224, %v1218
        %vm1227 = vcmask 195584
        %v1228 = vsel %vm1227, %v1226, %v1222
        %v1229 = vld [vmem:[%s5] sm:$0xff]
        %v1230 = vld [vmem:[%s5 + $0x8] sm:$0xff]
        %v1231 = vld [vmem:[%s5 + $0x10] sm:$0xff]
        %v1232 = vld [vmem:[%s5 + $0x18] sm:$0xff]
        %v1234 = vsel %vm439, %v1228, 0
        %1236 = vmatprep.subr.mxu0 0.0
        %1237 = vmatpush1.msra.mxu0 %v1229
        %1238 = vmatprep.subr.mxu0 0.0
        %1239 = vmatpush1.msra.mxu0 %v1230
        %1240 = vmatprep.subr.mxu0 0.0
        %1241 = vmatpush1.msra.mxu0 %v1231
        %1242 = vmatprep.subr.mxu0 0.0
        %1243 = vmatpush1.msra.mxu0 %v1232
        %1244 = vmatprep.subr.mxu0 0.0
        %1245 = vmatpush1.msra.mxu0 0.0
        %1246 = vmatprep.subr.mxu0 0.0
        %1247 = vmatpush1.msra.mxu0 0.0
        %1248 = vmatprep.subr.mxu0 0.0
        %1249 = vmatpush1.msra.mxu0 0.0
        %1250 = vmatprep.subr.mxu0 0.0
        %1251 = vmatpush1.msra.mxu0 0.0
        %1252 = vmatprep.subr.mxu0 0.0
        %1253 = vmatpush1.msra.mxu0 0.0
        %1254 = vmatprep.subr.mxu0 0.0
        %1255 = vmatpush1.msra.mxu0 0.0
        %1256 = vmatprep.subr.mxu0 0.0
        %1257 = vmatpush1.msra.mxu0 0.0
        %1258 = vmatprep.subr.mxu0 0.0
        %1259 = vmatpush1.msra.mxu0 0.0
        %1260 = vmatprep.subr.mxu0 0.0
        %1261 = vmatpush1.msra.mxu0 0.0
        %1262 = vmatprep.subr.mxu0 0.0
        %1263 = vmatpush1.msra.mxu0 0.0
        %1264 = vmatprep.subr.mxu0 0.0
        %1265 = vmatpush1.msra.mxu0 0.0
        %1266 = vmatprep.subr.mxu0 0.0
        %1267 = vmatpush1.msra.mxu0 0.0
        %1268 = vmatprep.subr.mxu0 0.0
        %1269 = vmatpush1.msra.mxu0 0.0
        %1270 = vmatprep.subr.mxu0 0.0
        %1271 = vmatpush1.msra.mxu0 0.0
        %1272 = vmatprep.subr.mxu0 0.0
        %1273 = vmatpush1.msra.mxu0 0.0
        %1274 = vmatprep.subr.mxu0 0.0
        %1275 = vmatpush1.msra.mxu0 0.0
        %1276 = vmatprep.subr.mxu0 0.0
        %1277 = vmatpush1.msra.mxu0 0.0
        %1278 = vmatprep.subr.mxu0 0.0
        %1279 = vmatpush1.msra.mxu0 0.0
        %1280 = vmatprep.subr.mxu0 0.0
        %1281 = vmatpush1.msra.mxu0 0.0
        %1282 = vmatprep.subr.mxu0 0.0
        %1283 = vmatpush1.msra.mxu0 0.0
        %1284 = vmatprep.subr.mxu0 0.0
        %1285 = vmatpush1.msra.mxu0 0.0
        %1286 = vmatprep.subr.mxu0 0.0
        %1287 = vmatpush1.msra.mxu0 0.0
        %1288 = vmatprep.subr.mxu0 0.0
        %1289 = vmatpush1.msra.mxu0 0.0
        %1290 = vmatprep.subr.mxu0 0.0
        %1291 = vmatpush1.msra.mxu0 0.0
        %1292 = vmatprep.subr.mxu0 0.0
        %1293 = vmatpush1.msra.mxu0 0.0
        %1294 = vmatprep.subr.mxu0 0.0
        %1295 = vmatpush1.msra.mxu0 0.0
        %1296 = vmatprep.subr.mxu0 0.0
        %1297 = vmatpush1.msra.mxu0 0.0
        %1298 = vmatprep.subr.mxu0 0.0
        %1299 = vmatpush1.msra.mxu0 0.0
        %1300 = vmatprep.mubr.f32.mxu0 0.0
        %1301 = vmatmul.mubr.f32.gmra.mrb[0].mxu0 %v1234
        %v1302 = vpop.f32.mrb[0].mxu0
        %v1303 = vadd.f32 0.0, %v1302
        %v1304 = vpop.f32.mrb[0].mxu0
        %1305 = vdwg.mxu0
        %v1306 = vadd.f32 %v436, %v1303
        %v1307 = vld [vmem:[%s6] sm:$0x1]
        %v1309 = vlaneseq
        %v1310 = vshrl.u32 %v1309, 7
        %v1311 = vsub.s32 0, %v1310
        %v1312 = vrot.slane %v1307, %v1311
        %v1314 = vadd.f32 %v1306, %v1312
        %v1315 = vld [vmem:[%s7] sm:$0x1]
        %v1316 = vld [vmem:[%s8] sm:$0x1]
        %v1317 = vsel %vm439, %v1314, 0.0
        %1318 = vadd.xlane.f32.xlu0 %v1317
        %v1319 = vpop.xlane.xlu0 %1318
        %v1320 = vmul.f32 %v1319, %v443
        %v1321 = vsub.f32 %v1314, %v1320
        %v1322 = vmul.f32 %v1321, %v1321
        %v1323 = vsel %vm439, %v1322, 0.0
        %1324 = vadd.xlane.f32.xlu0 %v1323
        %v1325 = vpop.xlane.xlu0 %1324
        %v1326 = vmul.f32 %v1325, %v443
        %v1327 = vadd.f32 %v1326, 1e-05
        %v1328 = vrsqrt.pop %v1327
        %v1329 = vmul.f32 %v1321, %v1328
        %v1331 = vlaneseq
        %v1332 = vshrl.u32 %v1331, 7
        %v1333 = vsub.s32 0, %v1332
        %v1334 = vrot.slane %v1315, %v1333
        %v1336 = vmul.f32 %v1329, %v1334
        %v1338 = vlaneseq
        %v1339 = vshrl.u32 %v1338, 7
        %v1340 = vsub.s32 0, %v1339
        %v1341 = vrot.slane %v1316, %v1340
        %v1343 = vadd.f32 %v1336, %v1341
        %v1344 = vld [vmem:[%s12] sm:$0x1]
        %v1346 = vlaneseq
        %v1347 = vshrl.u32 %v1346, 7
        %v1348 = vsub.s32 0, %v1347
        %v1349 = vrot.slane %v1344, %v1348
        %v1351 = vadd.f32 %v1314, %v1349
        %1352 = vst.msk [vmem:[#allocation2] sm:$0xff] %vm439, %v1351
        %v1353 = vld [vmem:[%s9] sm:$0xff]
        %v1354 = vld [vmem:[%s9 + $0x8] sm:$0xff]
        %v1355 = vld [vmem:[%s9 + $0x10] sm:$0xff]
        %v1356 = vld [vmem:[%s9 + $0x18] sm:$0xff]
        %v1357 = vld [vmem:[%s10] sm:$0x1]
        %v1359 = vlaneseq
        %v1360 = vshrl.u32 %v1359, 7
        %v1361 = vsub.s32 0, %v1360
        %v1362 = vrot.slane %v1357, %v1361
        %v1365 = vsel %vm439, %v1343, 0
        %1367 = vmatprep.subr.mxu0 0.0
        %1368 = vmatpush1.msra.mxu0 %v1353
        %1369 = vmatprep.subr.mxu0 0.0
        %1370 = vmatpush1.msra.mxu0 %v1354
        %1371 = vmatprep.subr.mxu0 0.0
        %1372 = vmatpush1.msra.mxu0 %v1355
        %1373 = vmatprep.subr.mxu0 0.0
        %1374 = vmatpush1.msra.mxu0 %v1356
        %1375 = vmatprep.subr.mxu0 0.0
        %1376 = vmatpush1.msra.mxu0 0.0
        %1377 = vmatprep.subr.mxu0 0.0
        %1378 = vmatpush1.msra.mxu0 0.0
        %1379 = vmatprep.subr.mxu0 0.0
        %1380 = vmatpush1.msra.mxu0 0.0
        %1381 = vmatprep.subr.mxu0 0.0
        %1382 = vmatpush1.msra.mxu0 0.0
        %1383 = vmatprep.subr.mxu0 0.0
        %1384 = vmatpush1.msra.mxu0 0.0
        %1385 = vmatprep.subr.mxu0 0.0
        %1386 = vmatpush1.msra.mxu0 0.0
        %1387 = vmatprep.subr.mxu0 0.0
        %1388 = vmatpush1.msra.mxu0 0.0
        %1389 = vmatprep.subr.mxu0 0.0
        %1390 = vmatpush1.msra.mxu0 0.0
        %1391 = vmatprep.subr.mxu0 0.0
        %1392 = vmatpush1.msra.mxu0 0.0
        %1393 = vmatprep.subr.mxu0 0.0
        %1394 = vmatpush1.msra.mxu0 0.0
        %1395 = vmatprep.subr.mxu0 0.0
        %1396 = vmatpush1.msra.mxu0 0.0
        %1397 = vmatprep.subr.mxu0 0.0
        %1398 = vmatpush1.msra.mxu0 0.0
        %1399 = vmatprep.subr.mxu0 0.0
        %1400 = vmatpush1.msra.mxu0 0.0
        %1401 = vmatprep.subr.mxu0 0.0
        %1402 = vmatpush1.msra.mxu0 0.0
        %1403 = vmatprep.subr.mxu0 0.0
        %1404 = vmatpush1.msra.mxu0 0.0
        %1405 = vmatprep.subr.mxu0 0.0
        %1406 = vmatpush1.msra.mxu0 0.0
        %1407 = vmatprep.subr.mxu0 0.0
        %1408 = vmatpush1.msra.mxu0 0.0
        %1409 = vmatprep.subr.mxu0 0.0
        %1410 = vmatpush1.msra.mxu0 0.0
        %1411 = vmatprep.subr.mxu0 0.0
        %1412 = vmatpush1.msra.mxu0 0.0
        %1413 = vmatprep.subr.mxu0 0.0
        %1414 = vmatpush1.msra.mxu0 0.0
        %1415 = vmatprep.subr.mxu0 0.0
        %1416 = vmatpush1.msra.mxu0 0.0
        %1417 = vmatprep.subr.mxu0 0.0
        %1418 = vmatpush1.msra.mxu0 0.0
        %1419 = vmatprep.subr.mxu0 0.0
        %1420 = vmatpush1.msra.mxu0 0.0
        %1421 = vmatprep.subr.mxu0 0.0
        %1422 = vmatpush1.msra.mxu0 0.0
        %1423 = vmatprep.subr.mxu0 0.0
        %1424 = vmatpush1.msra.mxu0 0.0
        %1425 = vmatprep.subr.mxu0 0.0
        %1426 = vmatpush1.msra.mxu0 0.0
        %1427 = vmatprep.subr.mxu0 0.0
        %1428 = vmatpush1.msra.mxu0 0.0
        %1429 = vmatprep.subr.mxu0 0.0
        %1430 = vmatpush1.msra.mxu0 0.0
        %1431 = vmatprep.mubr.f32.mxu0 0.0
        %1432 = vmatmul.mubr.f32.gmra.mrb[0].mxu0 %v1365
        %v1433 = vpop.f32.mrb[0].mxu0
        %v1434 = vadd.f32 %v1362, %v1433
        %v1435 = vpop.f32.mrb[0].mxu0
        %1436 = vdwg.mxu0
        %v1437 = vmul.f32 %v1434, 1.702
        %v1438 = vxor.u32 %v1437, 2147483648
        %v1439 = vmul.f32 %v1438, 1.442695
        %v1440 = vpow.pop %v1439
        %v1441 = vadd.f32 %v1440, 1.0
        %v1442 = vrcp.pop %v1441
        %v1443 = vmul.f32 1.0, %v1442
        %v1444 = vmul.f32 %v1434, %v1443
        %v1445 = vld [vmem:[#allocation2] sm:$0xff]
        %v1446 = vld [vmem:[%s11] sm:$0xff]
        %v1447 = vld [vmem:[%s11 + $0x8] sm:$0xff]
        %v1448 = vld [vmem:[%s11 + $0x10] sm:$0xff]
        %v1449 = vld [vmem:[%s11 + $0x18] sm:$0xff]
        %v1450 = vld [vmem:[%s11 + $0x20] sm:$0xff]
        %v1451 = vld [vmem:[%s11 + $0x28] sm:$0xff]
        %v1452 = vld [vmem:[%s11 + $0x30] sm:$0xff]
        %v1453 = vld [vmem:[%s11 + $0x38] sm:$0xff]
        %v1454 = vld [vmem:[%s11 + $0x40] sm:$0xff]
        %v1455 = vld [vmem:[%s11 + $0x48] sm:$0xff]
        %v1456 = vld [vmem:[%s11 + $0x50] sm:$0xff]
        %v1457 = vld [vmem:[%s11 + $0x58] sm:$0xff]
        %v1458 = vld [vmem:[%s11 + $0x60] sm:$0xff]
        %v1459 = vld [vmem:[%s11 + $0x68] sm:$0xff]
        %v1460 = vld [vmem:[%s11 + $0x70] sm:$0xff]
        %v1461 = vld [vmem:[%s11 + $0x78] sm:$0xff]
        %1462 = vmatprep.subr.mxu0 0.0
        %1463 = vmatpush1.msra.mxu0 %v1446
        %1464 = vmatprep.subr.mxu0 0.0
        %1465 = vmatpush1.msra.mxu0 %v1447
        %1466 = vmatprep.subr.mxu0 0.0
        %1467 = vmatpush1.msra.mxu0 %v1448
        %1468 = vmatprep.subr.mxu0 0.0
        %1469 = vmatpush1.msra.mxu0 %v1449
        %1470 = vmatprep.subr.mxu0 0.0
        %1471 = vmatpush1.msra.mxu0 %v1450
        %1472 = vmatprep.subr.mxu0 0.0
        %1473 = vmatpush1.msra.mxu0 %v1451
        %1474 = vmatprep.subr.mxu0 0.0
        %1475 = vmatpush1.msra.mxu0 %v1452
        %1476 = vmatprep.subr.mxu0 0.0
        %1477 = vmatpush1.msra.mxu0 %v1453
        %1478 = vmatprep.subr.mxu0 0.0
        %1479 = vmatpush1.msra.mxu0 %v1454
        %1480 = vmatprep.subr.mxu0 0.0
        %1481 = vmatpush1.msra.mxu0 %v1455
        %1482 = vmatprep.subr.mxu0 0.0
        %1483 = vmatpush1.msra.mxu0 %v1456
        %1484 = vmatprep.subr.mxu0 0.0
        %1485 = vmatpush1.msra.mxu0 %v1457
        %1486 = vmatprep.subr.mxu0 0.0
        %1487 = vmatpush1.msra.mxu0 %v1458
        %1488 = vmatprep.subr.mxu0 0.0
        %1489 = vmatpush1.msra.mxu0 %v1459
        %1490 = vmatprep.subr.mxu0 0.0
        %1491 = vmatpush1.msra.mxu0 %v1460
        %1492 = vmatprep.subr.mxu0 0.0
        %1493 = vmatpush1.msra.mxu0 %v1461
        %1494 = vmatprep.subr.mxu0 0.0
        %1495 = vmatpush1.msra.mxu0 0.0
        %1496 = vmatprep.subr.mxu0 0.0
        %1497 = vmatpush1.msra.mxu0 0.0
        %1498 = vmatprep.subr.mxu0 0.0
        %1499 = vmatpush1.msra.mxu0 0.0
        %1500 = vmatprep.subr.mxu0 0.0
        %1501 = vmatpush1.msra.mxu0 0.0
        %1502 = vmatprep.subr.mxu0 0.0
        %1503 = vmatpush1.msra.mxu0 0.0
        %1504 = vmatprep.subr.mxu0 0.0
        %1505 = vmatpush1.msra.mxu0 0.0
        %1506 = vmatprep.subr.mxu0 0.0
        %1507 = vmatpush1.msra.mxu0 0.0
        %1508 = vmatprep.subr.mxu0 0.0
        %1509 = vmatpush1.msra.mxu0 0.0
        %1510 = vmatprep.subr.mxu0 0.0
        %1511 = vmatpush1.msra.mxu0 0.0
        %1512 = vmatprep.subr.mxu0 0.0
        %1513 = vmatpush1.msra.mxu0 0.0
        %1514 = vmatprep.subr.mxu0 0.0
        %1515 = vmatpush1.msra.mxu0 0.0
        %1516 = vmatprep.subr.mxu0 0.0
        %1517 = vmatpush1.msra.mxu0 0.0
        %1518 = vmatprep.subr.mxu0 0.0
        %1519 = vmatpush1.msra.mxu0 0.0
        %1520 = vmatprep.subr.mxu0 0.0
        %1521 = vmatpush1.msra.mxu0 0.0
        %1522 = vmatprep.subr.mxu0 0.0
        %1523 = vmatpush1.msra.mxu0 0.0
        %1524 = vmatprep.subr.mxu0 0.0
        %1525 = vmatpush1.msra.mxu0 0.0
        %1526 = vmatprep.mubr.f32.mxu0 0.0
        %1527 = vmatmul.mubr.f32.gmra.mrb[0].mxu0 %v1444
        %v1528 = vpop.f32.mrb[0].mxu0
        %v1529 = vadd.f32 0.0, %v1528
        %v1530 = vpop.f32.mrb[0].mxu0
        %1531 = vdwg.mxu0
        %v1532 = vadd.f32 %v1445, %v1529
        %1533 = vst.msk [vmem:[#allocation2] sm:$0xff] %vm439, %v1532
        %v1534 = vld [vmem:[#allocation2] sm:$0xff]
        %1535 = vst.msk [vmem:[%s431] sm:$0xff] %vm439, %v1534
        %s1536 = sand.u32 %s313, 1
        %s1537 = scalar_lea.sflag [#allocation4], %s1536
        %s1538 = sand.u32 %s313, 1
        %s1539 = smul.addr %s1538, 8
        %s1540 = scalar_lea.vmem [#allocation3], %s1539
        // Predicated region
        $region73: #{tpu_custom_call.1} parent=71 // pred_check
          %p1541 = pneg %p323
        $region74: #{tpu_custom_call.1} parent=71 // pred_check_branch
          %1543 = sbr.rel (%p1541) target = $region76
        $region75: #{tpu_custom_call.1} parent=71 // pred_region
          %s1545 = ssub.s32 128, 128
          %1546 = vsyncadd %s1537, %s1545
          %s1547 = smul.addr %s27, 128
          %s1548 = scalar_lea.hbm %s13, %s1547
          %s1550 = sshll.u32 %s1540, 4
          %s1551 = int_to_ptr.vmem [resolvable:$true] %s1550
          %1553 = dma.vmem_to_hbm [thread:$0]  %s1551, 128, %s1548, %s1537
        $region76: #{tpu_custom_call.1} parent=71 // pred_fallthru
          _
      $region72: #{tpu_custom_call.1} parent=5 // pred_fallthru
        _
      %p1554 = scmp.le.s32.totalorder 2, %s22
      // Predicated region
      $region77: #{tpu_custom_call.1} parent=5 // pred_check
        %p1555 = pneg %p1554
      $region78: #{tpu_custom_call.1} parent=5 // pred_check_branch
        %1557 = sbr.rel (%p1555) target = $region80
      $region79: #{tpu_custom_call.1} parent=5 // pred_region
        %s1558 = ssub.s32 %s22, 2
        // Predicated region
        $region81: #{tpu_custom_call.1} parent=79 // pred_check
          %p1559 = pneg %p329
        $region82: #{tpu_custom_call.1} parent=79 // pred_check_branch
          %1561 = sbr.rel (%p1559) target = $region84
        $region83: #{tpu_custom_call.1} parent=79 // pred_region
          %s1562 = sand.u32 %s314, 1
          %s1563 = scalar_lea.sflag [#allocation4], %s1562
          %s1564 = sand.u32 %s314, 1
          %s1565 = smul.addr %s1564, 8
          %s1566 = scalar_lea.vmem [#allocation3], %s1565
          %1567 = dma.done %s1563, 128
        $region84: #{tpu_custom_call.1} parent=79 // pred_fallthru
          _
      $region80: #{tpu_custom_call.1} parent=5 // pred_fallthru
        _
    $region6: #{tpu_custom_call.1} parent=1 // loop_footer
      %s26 = sadd.s32 1, %s22
    $region7: #{tpu_custom_call.1} parent=1 // loop_footer_branch
      %21 = sbr.rel target = $region3
    $region8: #{tpu_custom_call.1} parent=1 // loop_exit
      _
    %1568 = vsyncpa [#allocation4], 1
    %s1569 = scalar_lea.sflag [#allocation4], 1
    %1570 = vsyncpa %s1569, 1

</llo_original>
